<compile_context>
chip_gen: v7x
topology: tpu7x:2x2x1
jax: 0.10.0
libtpu: 0.0.40
codegen_flags: <defaults>
</compile_context>

<pallas_src>
import functools

import jax
import jax.numpy as jnp
from jax import lax
from jax.experimental import pallas as pl
from jax.experimental.pallas import tpu as pltpu

LRN_SIZE, LRN_ALPHA, LRN_BETA, LRN_K = 5, 1e-4, 0.75, 1.0


# ---------------------------------------------------------------------------
# Kernel 1 (fused feature extractor, one grid step per scale):
#   conv1(3x3) + bias + ReLU  ->  conv2(3x3) + bias
#   -> LocalResponseNorm(size=5, alpha=1e-4, beta=0.75, k=1)  -> cos window
# Channel-major layout: every tensor has H*W as its (lane-dense) last dim.
# ---------------------------------------------------------------------------
def _fused_feature_kernel(p1_ref, w1t_ref, b1_ref, w2_ref, b2_ref, band_ref,
                          mask_ref, cos_ref, o_ref, *, img_w):
    # p1_ref : (1, 9*Cin, HW)  conv1 im2col patches (one scale), tap-major rows
    # w1t_ref: (C1, 9*Cin)     conv1 weights, transposed
    # b1_ref : (C1, 1)
    # w2_ref : (9, C2, C1)     conv2 weights, one (C2, C1) slab per tap
    # b2_ref : (C2, 1)
    # band_ref: (C2, C2)       LRN band matrix (1 where |i-j| <= size//2)
    # mask_ref: (9, 1, HW)     per-tap border-validity masks
    # cos_ref: (1, HW)         flattened hanning window
    # o_ref  : (1, C2, HW)
    hw = p1_ref.shape[-1]

    # ---- conv1: one channel-major MXU matmul + bias + ReLU ----
    y1 = jnp.dot(w1t_ref[...], p1_ref[0], preferred_element_type=jnp.float32)
    y1 = jnp.maximum(y1 + b1_ref[...], 0.0)                      # (C1, HW)

    # ---- conv2: 9 taps via lane rolls + border masks, accumulated matmuls ---
    acc = None
    for t in range(9):
        dy, dx = divmod(t, 3)
        s = (dy - 1) * img_w + (dx - 1)         # flat-index shift of this tap
        if s == 0:
            v = y1                              # centre tap: no roll, no mask
        else:
            v = pltpu.roll(y1, shift=(-s) % hw, axis=1) * mask_ref[t]
        d = jnp.dot(w2_ref[t], v, preferred_element_type=jnp.float32)
        acc = d if acc is None else acc + d
    acc = acc + b2_ref[...]                                      # (C2, HW)

    # ---- LRN across channels (zero-padded window, /size as in PyTorch) ----
    winsum = jnp.dot(band_ref[...], acc * acc,
                     preferred_element_type=jnp.float32)
    t_ = LRN_K + (LRN_ALPHA / LRN_SIZE) * winsum
    inv = lax.rsqrt(t_)                                          # t**-0.5 (EUP)
    y = acc * (inv * jnp.sqrt(inv))                              # acc * t**-0.75

    # ---- cos (hanning) window, lane-dense store ----
    o_ref[0] = y * cos_ref[...]                                  # (C2, HW)


# ---------------------------------------------------------------------------
# Kernel 2: frequency-domain cross correlation with wf + sum over channels
#   real = wf_re*z_re + wf_im*z_im ; imag = wf_re*z_im - z_re*wf_im
#   (H, Wf) flattened + padded to a 128-multiple; channel reduce on the MXU;
#   one (1, 2, L) output per scale (real stacked on imag).
# ---------------------------------------------------------------------------
def _xcorr_sum_kernel(zr_ref, zi_ref, wr_ref, wi_ref, ones_ref, o_ref):
    # zr/zi: (1, C, L) ; wr/wi: (C, L) ; ones: (1, C) ; o: (1, 2, L)
    zr = zr_ref[0]
    zi = zi_ref[0]
    wr = wr_ref[...]
    wi = wi_ref[...]
    ones = ones_ref[...]
    re = jnp.dot(ones, wr * zr + wi * zi, preferred_element_type=jnp.float32)
    im = jnp.dot(ones, wr * zi - zr * wi, preferred_element_type=jnp.float32)
    o_ref[0] = jnp.concatenate([re, im], axis=0)                 # (2, L)


# ---------------------------------------------------------------------------
# Wrapper
# ---------------------------------------------------------------------------
def dcfnet_forward(z_nchw, params, cos_window, wf_re, wf_im):
    """Forward pass of DCFNet.

    z_nchw: (num_scale, 3, crop_sz, crop_sz) float32
    returns: (num_scale, 1, crop_sz, crop_sz) float32
    """
    n, cin, h, w = z_nchw.shape
    c1 = params["w1"].shape[-1]
    c2 = params["w2"].shape[-1]
    hw = h * w

    # conv1 im2col, channel-major: (n, 9*Cin, H*W), tap-major rows.
    xp = jnp.pad(z_nchw.astype(jnp.float32), ((0, 0), (0, 0), (1, 1), (1, 1)))
    patches1 = jnp.concatenate(
        [xp[:, :, dy:dy + h, dx:dx + w] for dy in range(3) for dx in range(3)],
        axis=1).reshape(n, 9 * cin, hw)

    w1t = params["w1"].reshape(9 * cin, c1).T.astype(jnp.float32)     # (C1,27)
    w2_taps = jnp.transpose(params["w2"], (0, 2, 1)).astype(jnp.float32)  # (9,C2,C1)
    b1c = params["b1"].reshape(c1, 1).astype(jnp.float32)
    b2c = params["b2"].reshape(c2, 1).astype(jnp.float32)

    c_idx = jnp.arange(c2)
    band = (jnp.abs(c_idx[:, None] - c_idx[None, :]) <= LRN_SIZE // 2).astype(
        jnp.float32)

    # Per-tap border-validity masks for conv2's rolled taps.
    ys = jnp.arange(h)
    xs = jnp.arange(w)
    masks = []
    for dy in range(3):
        vy = ((ys + dy - 1 >= 0) & (ys + dy - 1 < h)).astype(jnp.float32)
        for dx in range(3):
            vx = ((xs + dx - 1 >= 0) & (xs + dx - 1 < w)).astype(jnp.float32)
            masks.append((vy[:, None] * vx[None, :]).reshape(1, hw))
    mask9 = jnp.stack(masks, axis=0)                                 # (9,1,HW)

    cos_flat = cos_window.astype(jnp.float32).reshape(1, hw)

    rep2 = lambda i: (0, 0)
    rep3 = lambda i: (0, 0, 0)
    feat = pl.pallas_call(
        functools.partial(_fused_feature_kernel, img_w=w),
        out_shape=jax.ShapeDtypeStruct((n, c2, hw), jnp.float32),
        grid=(n,),
        in_specs=[
            pl.BlockSpec((1, 9 * cin, hw), lambda i: (i, 0, 0)),
            pl.BlockSpec(w1t.shape, rep2),
            pl.BlockSpec(b1c.shape, rep2),
            pl.BlockSpec(w2_taps.shape, rep3),
            pl.BlockSpec(b2c.shape, rep2),
            pl.BlockSpec(band.shape, rep2),
            pl.BlockSpec(mask9.shape, rep3),
            pl.BlockSpec(cos_flat.shape, rep2),
        ],
        out_specs=pl.BlockSpec((1, c2, hw), lambda i: (i, 0, 0)),
        compiler_params=pltpu.CompilerParams(
            dimension_semantics=("parallel",)),
    )(patches1, w1t, b1c, w2_taps, b2c, band, mask9, cos_flat)

    # Kernel output is already (n, C2, H, W)-ordered: reshape only, no transpose.
    feat_nchw = feat.reshape(n, c2, h, w)
    # TODO(synk): 2-D rfft/irfft has no Pallas equivalent; done in plain JAX.
    zf = jnp.fft.rfft2(feat_nchw, axes=(-2, -1))
    zr = jnp.real(zf).astype(jnp.float32)
    zi = jnp.imag(zf).astype(jnp.float32)

    wf_w = zf.shape[-1]
    l = h * wf_w
    lpad = pl.cdiv(l, 128) * 128
    pad = lpad - l
    zr_f = jnp.pad(zr.reshape(n, c2, l), ((0, 0), (0, 0), (0, pad)))
    zi_f = jnp.pad(zi.reshape(n, c2, l), ((0, 0), (0, 0), (0, pad)))
    wr_f = jnp.pad(wf_re.astype(jnp.float32).reshape(c2, l), ((0, 0), (0, pad)))
    wi_f = jnp.pad(wf_im.astype(jnp.float32).reshape(c2, l), ((0, 0), (0, pad)))
    ones = jnp.ones((1, c2), jnp.float32)

    re_im = pl.pallas_call(
        _xcorr_sum_kernel,
        out_shape=jax.ShapeDtypeStruct((n, 2, lpad), jnp.float32),
        grid=(n,),
        in_specs=[
            pl.BlockSpec((1, c2, lpad), lambda i: (i, 0, 0)),
            pl.BlockSpec((1, c2, lpad), lambda i: (i, 0, 0)),
            pl.BlockSpec((c2, lpad), rep2),
            pl.BlockSpec((c2, lpad), rep2),
            pl.BlockSpec((1, c2), rep2),
        ],
        out_specs=pl.BlockSpec((1, 2, lpad), lambda i: (i, 0, 0)),
        compiler_params=pltpu.CompilerParams(
            dimension_semantics=("parallel",)),
    )(zr_f, zi_f, wr_f, wi_f, ones)

    re_sum = re_im[:, 0, :l].reshape(n, 1, h, wf_w)
    im_sum = re_im[:, 1, :l].reshape(n, 1, h, wf_w)
    phi = (re_sum + 1j * im_sum).astype(jnp.complex64)
    response = jnp.fft.irfft2(phi, axes=(-2, -1))
    return jnp.real(response).astype(jnp.float32)


# ---------------------------------------------------------------------------
# Pure-JAX reference (same math, standard XLA ops) for a sanity check.
# ---------------------------------------------------------------------------
def _reference(z_nchw, params, cos_window, wf_re, wf_im):
    w1 = params["w1"].reshape(3, 3, -1, 32)
    w2 = params["w2"].reshape(3, 3, 32, 32)
    x = jnp.transpose(z_nchw, (0, 2, 3, 1))
    y = lax.conv_general_dilated(
        x, w1, (1, 1), "SAME",
        dimension_numbers=("NHWC", "HWIO", "NHWC")) + params["b1"][0]
    y = jnp.maximum(y, 0.0)
    y = lax.conv_general_dilated(
        y, w2, (1, 1), "SAME",
        dimension_numbers=("NHWC", "HWIO", "NHWC")) + params["b2"][0]
    c = y.shape[-1]
    sq = y * y
    padded = jnp.pad(sq, ((0, 0), (0, 0), (0, 0),
                          (LRN_SIZE // 2, (LRN_SIZE - 1) // 2)))
    winsum = sum(padded[..., i:i + c] for i in range(LRN_SIZE))
    denom = (LRN_K + (LRN_ALPHA / LRN_SIZE) * winsum) ** LRN_BETA
    y = (y / denom) * cos_window[None, :, :, None]
    feat = jnp.transpose(y, (0, 3, 1, 2))
    zf = jnp.fft.rfft2(feat, axes=(-2, -1))
    wfc = wf_re.astype(jnp.complex64) + 1j * wf_im.astype(jnp.complex64)
    phi = jnp.conj(wfc)[None] * zf
    resp = jnp.fft.irfft2(jnp.sum(phi, axis=1, keepdims=True), axes=(-2, -1))
    return jnp.real(resp).astype(jnp.float32)


if __name__ == "__main__":
    key = jax.random.PRNGKey(0)
    k1, k2, k3, k4, k5, k6 = jax.random.split(key, 6)

    NUM_SCALE, CIN, CROP = 2, 3, 16
    COUT = 32
    WF = CROP // 2 + 1

    # Deterministic synthetic parameters (Conv2d(3,32,3), Conv2d(32,32,3)),
    # stored as (9, Cin, Cout) = taps-major to feed the channel-major kernels.
    params = {
        "w1": (0.1 * jax.random.normal(k1, (9, CIN, COUT))).astype(jnp.float32),
        "b1": (0.1 * jax.random.normal(k2, (1, COUT))).astype(jnp.float32),
        "w2": (0.1 * jax.random.normal(k3, (9, COUT, COUT))).astype(jnp.float32),
        "b2": (0.1 * jax.random.normal(k4, (1, COUT))).astype(jnp.float32),
    }

    # cos (hanning) window, crop_sz x crop_sz.
    nvec = jnp.arange(CROP, dtype=jnp.float32)
    han = 0.5 - 0.5 * jnp.cos(2.0 * jnp.pi * nvec / (CROP - 1))
    cos_window = jnp.outer(han, han).astype(jnp.float32)

    # Synthetic correlation-filter FFT wf (normally set by DCFNet.update()).
    wf_re = (0.1 * jax.random.normal(k5, (COUT, CROP, WF))).astype(jnp.float32)
    wf_im = (0.1 * jax.random.normal(k6, (COUT, CROP, WF))).astype(jnp.float32)

    # Input: multiscale search patches (num_scale, 3, crop_sz, crop_sz).
    z = jax.random.normal(jax.random.PRNGKey(42),
                          (NUM_SCALE, CIN, CROP, CROP), dtype=jnp.float32)

    out = dcfnet_forward(z, params, cos_window, wf_re, wf_im)
    out = jax.block_until_ready(out)
    assert out.shape == (NUM_SCALE, 1, CROP, CROP), out.shape

    ref = jax.block_until_ready(_reference(z, params, cos_window, wf_re, wf_im))
    assert jnp.allclose(out, ref, rtol=5e-3, atol=5e-2), (
        float(jnp.max(jnp.abs(out - ref))))

    print("KERNEL_OK")
</pallas_src>

<mosaic_0001>
module attributes {stable_mosaic.version = 11 : i64} {
  func.func @_fused_feature_kernel(%arg0: i32, %arg1: memref<1x27x256xf32, #tpu.memory_space<vmem>>, %arg2: memref<32x27xf32, #tpu.memory_space<vmem>>, %arg3: memref<32x1xf32, #tpu.memory_space<vmem>>, %arg4: memref<9x32x32xf32, #tpu.memory_space<vmem>>, %arg5: memref<32x1xf32, #tpu.memory_space<vmem>>, %arg6: memref<32x32xf32, #tpu.memory_space<vmem>>, %arg7: memref<9x1x256xf32, #tpu.memory_space<vmem>>, %arg8: memref<1x256xf32, #tpu.memory_space<vmem>>, %arg9: memref<1x32x256xf32, #tpu.memory_space<vmem>>) attributes {dimension_semantics = [#tpu.dimension_semantics<parallel>], iteration_bounds = array<i64: 2>, scalar_prefetch = 0 : i64, scratch_operands = 0 : i64, tpu.core_type = #tpu.core_type<tc>, window_params = [{transform_indices = @transform_0, window_bounds = array<i64: 1, 27, 256>}, {pipeline_mode = #tpu.pipeline_mode<synchronous>, transform_indices = @transform_1, window_bounds = array<i64: 32, 27>}, {pipeline_mode = #tpu.pipeline_mode<synchronous>, transform_indices = @transform_2, window_bounds = array<i64: 32, 1>}, {pipeline_mode = #tpu.pipeline_mode<synchronous>, transform_indices = @transform_3, window_bounds = array<i64: 9, 32, 32>}, {pipeline_mode = #tpu.pipeline_mode<synchronous>, transform_indices = @transform_4, window_bounds = array<i64: 32, 1>}, {pipeline_mode = #tpu.pipeline_mode<synchronous>, transform_indices = @transform_5, window_bounds = array<i64: 32, 32>}, {pipeline_mode = #tpu.pipeline_mode<synchronous>, transform_indices = @transform_6, window_bounds = array<i64: 9, 1, 256>}, {pipeline_mode = #tpu.pipeline_mode<synchronous>, transform_indices = @transform_7, window_bounds = array<i64: 1, 256>}, {transform_indices = @transform_8, window_bounds = array<i64: 1, 32, 256>}]} {
    %c0 = arith.constant 0 : index
    %c0_0 = arith.constant 0 : index
    %0 = vector.load %arg2[%c0, %c0_0] : memref<32x27xf32, #tpu.memory_space<vmem>>, vector<32x27xf32>
    %c0_1 = arith.constant 0 : index
    %c0_2 = arith.constant 0 : index
    %c0_3 = arith.constant 0 : index
    %1 = vector.load %arg1[%c0_1, %c0_2, %c0_3] : memref<1x27x256xf32, #tpu.memory_space<vmem>>, vector<1x27x256xf32>
    %2 = vector.shape_cast %1 : vector<1x27x256xf32> to vector<27x256xf32>
    %cst = arith.constant dense<0.000000e+00> : vector<32x256xf32>
    %3 = tpu.matmul %0, %2, %cst {dimension_numbers = #tpu.dot_dimension_numbers<[1], [0], [0], [1], [0, 0, 1, 1], [], []>} : vector<32x27xf32>, vector<27x256xf32>, vector<32x256xf32> -> vector<32x256xf32>
    %c0_4 = arith.constant 0 : index
    %c0_5 = arith.constant 0 : index
    %4 = vector.load %arg3[%c0_4, %c0_5] : memref<32x1xf32, #tpu.memory_space<vmem>>, vector<32x1xf32>
    %5 = vector.broadcast %4 : vector<32x1xf32> to vector<32x256xf32>
    %6 = arith.addf %3, %5 : vector<32x256xf32>
    %cst_6 = arith.constant 0.000000e+00 : f32
    %7 = vector.broadcast %cst_6 : f32 to vector<32x256xf32>
    %8 = arith.maximumf %6, %7 : vector<32x256xf32>
    %c17_i32 = arith.constant 17 : i32
    %9 = tpu.dynamic_rotate %8 by %c17_i32 dim 1 : vector<32x256xf32>, i32 -> vector<32x256xf32>
    %c0_7 = arith.constant 0 : index
    %c0_8 = arith.constant 0 : index
    %c0_9 = arith.constant 0 : index
    %10 = vector.load %arg7[%c0_7, %c0_8, %c0_9] : memref<9x1x256xf32, #tpu.memory_space<vmem>>, vector<1x1x256xf32>
    %11 = vector.shape_cast %10 : vector<1x1x256xf32> to vector<1x256xf32>
    %12 = vector.broadcast %11 : vector<1x256xf32> to vector<32x256xf32>
    %13 = arith.mulf %9, %12 : vector<32x256xf32>
    %c0_10 = arith.constant 0 : index
    %c0_11 = arith.constant 0 : index
    %c0_12 = arith.constant 0 : index
    %14 = vector.load %arg4[%c0_10, %c0_11, %c0_12] : memref<9x32x32xf32, #tpu.memory_space<vmem>>, vector<1x32x32xf32>
    %15 = vector.shape_cast %14 : vector<1x32x32xf32> to vector<32x32xf32>
    %cst_13 = arith.constant dense<0.000000e+00> : vector<32x256xf32>
    %16 = tpu.matmul %15, %13, %cst_13 {dimension_numbers = #tpu.dot_dimension_numbers<[1], [0], [0], [1], [0, 0, 1, 1], [], []>} : vector<32x32xf32>, vector<32x256xf32>, vector<32x256xf32> -> vector<32x256xf32>
    %c16_i32 = arith.constant 16 : i32
    %17 = tpu.dynamic_rotate %8 by %c16_i32 dim 1 : vector<32x256xf32>, i32 -> vector<32x256xf32>
    %c1 = arith.constant 1 : index
    %c0_14 = arith.constant 0 : index
    %c0_15 = arith.constant 0 : index
    %18 = vector.load %arg7[%c1, %c0_14, %c0_15] : memref<9x1x256xf32, #tpu.memory_space<vmem>>, vector<1x1x256xf32>
    %19 = vector.shape_cast %18 : vector<1x1x256xf32> to vector<1x256xf32>
    %20 = vector.broadcast %19 : vector<1x256xf32> to vector<32x256xf32>
    %21 = arith.mulf %17, %20 : vector<32x256xf32>
    %c1_16 = arith.constant 1 : index
    %c0_17 = arith.constant 0 : index
    %c0_18 = arith.constant 0 : index
    %22 = vector.load %arg4[%c1_16, %c0_17, %c0_18] : memref<9x32x32xf32, #tpu.memory_space<vmem>>, vector<1x32x32xf32>
    %23 = vector.shape_cast %22 : vector<1x32x32xf32> to vector<32x32xf32>
    %cst_19 = arith.constant dense<0.000000e+00> : vector<32x256xf32>
    %24 = tpu.matmul %23, %21, %cst_19 {dimension_numbers = #tpu.dot_dimension_numbers<[1], [0], [0], [1], [0, 0, 1, 1], [], []>} : vector<32x32xf32>, vector<32x256xf32>, vector<32x256xf32> -> vector<32x256xf32>
    %25 = arith.addf %16, %24 : vector<32x256xf32>
    %c15_i32 = arith.constant 15 : i32
    %26 = tpu.dynamic_rotate %8 by %c15_i32 dim 1 : vector<32x256xf32>, i32 -> vector<32x256xf32>
    %c2 = arith.constant 2 : index
    %c0_20 = arith.constant 0 : index
    %c0_21 = arith.constant 0 : index
    %27 = vector.load %arg7[%c2, %c0_20, %c0_21] : memref<9x1x256xf32, #tpu.memory_space<vmem>>, vector<1x1x256xf32>
    %28 = vector.shape_cast %27 : vector<1x1x256xf32> to vector<1x256xf32>
    %29 = vector.broadcast %28 : vector<1x256xf32> to vector<32x256xf32>
    %30 = arith.mulf %26, %29 : vector<32x256xf32>
    %c2_22 = arith.constant 2 : index
    %c0_23 = arith.constant 0 : index
    %c0_24 = arith.constant 0 : index
    %31 = vector.load %arg4[%c2_22, %c0_23, %c0_24] : memref<9x32x32xf32, #tpu.memory_space<vmem>>, vector<1x32x32xf32>
    %32 = vector.shape_cast %31 : vector<1x32x32xf32> to vector<32x32xf32>
    %cst_25 = arith.constant dense<0.000000e+00> : vector<32x256xf32>
    %33 = tpu.matmul %32, %30, %cst_25 {dimension_numbers = #tpu.dot_dimension_numbers<[1], [0], [0], [1], [0, 0, 1, 1], [], []>} : vector<32x32xf32>, vector<32x256xf32>, vector<32x256xf32> -> vector<32x256xf32>
    %34 = arith.addf %25, %33 : vector<32x256xf32>
    %c1_i32 = arith.constant 1 : i32
    %35 = tpu.dynamic_rotate %8 by %c1_i32 dim 1 : vector<32x256xf32>, i32 -> vector<32x256xf32>
    %c3 = arith.constant 3 : index
    %c0_26 = arith.constant 0 : index
    %c0_27 = arith.constant 0 : index
    %36 = vector.load %arg7[%c3, %c0_26, %c0_27] : memref<9x1x256xf32, #tpu.memory_space<vmem>>, vector<1x1x256xf32>
    %37 = vector.shape_cast %36 : vector<1x1x256xf32> to vector<1x256xf32>
    %38 = vector.broadcast %37 : vector<1x256xf32> to vector<32x256xf32>
    %39 = arith.mulf %35, %38 : vector<32x256xf32>
    %c3_28 = arith.constant 3 : index
    %c0_29 = arith.constant 0 : index
    %c0_30 = arith.constant 0 : index
    %40 = vector.load %arg4[%c3_28, %c0_29, %c0_30] : memref<9x32x32xf32, #tpu.memory_space<vmem>>, vector<1x32x32xf32>
    %41 = vector.shape_cast %40 : vector<1x32x32xf32> to vector<32x32xf32>
    %cst_31 = arith.constant dense<0.000000e+00> : vector<32x256xf32>
    %42 = tpu.matmul %41, %39, %cst_31 {dimension_numbers = #tpu.dot_dimension_numbers<[1], [0], [0], [1], [0, 0, 1, 1], [], []>} : vector<32x32xf32>, vector<32x256xf32>, vector<32x256xf32> -> vector<32x256xf32>
    %43 = arith.addf %34, %42 : vector<32x256xf32>
    %c4 = arith.constant 4 : index
    %c0_32 = arith.constant 0 : index
    %c0_33 = arith.constant 0 : index
    %44 = vector.load %arg4[%c4, %c0_32, %c0_33] : memref<9x32x32xf32, #tpu.memory_space<vmem>>, vector<1x32x32xf32>
    %45 = vector.shape_cast %44 : vector<1x32x32xf32> to vector<32x32xf32>
    %cst_34 = arith.constant dense<0.000000e+00> : vector<32x256xf32>
    %46 = tpu.matmul %45, %8, %cst_34 {dimension_numbers = #tpu.dot_dimension_numbers<[1], [0], [0], [1], [0, 0, 1, 1], [], []>} : vector<32x32xf32>, vector<32x256xf32>, vector<32x256xf32> -> vector<32x256xf32>
    %47 = arith.addf %43, %46 : vector<32x256xf32>
    %c255_i32 = arith.constant 255 : i32
    %48 = tpu.dynamic_rotate %8 by %c255_i32 dim 1 : vector<32x256xf32>, i32 -> vector<32x256xf32>
    %c5 = arith.constant 5 : index
    %c0_35 = arith.constant 0 : index
    %c0_36 = arith.constant 0 : index
    %49 = vector.load %arg7[%c5, %c0_35, %c0_36] : memref<9x1x256xf32, #tpu.memory_space<vmem>>, vector<1x1x256xf32>
    %50 = vector.shape_cast %49 : vector<1x1x256xf32> to vector<1x256xf32>
    %51 = vector.broadcast %50 : vector<1x256xf32> to vector<32x256xf32>
    %52 = arith.mulf %48, %51 : vector<32x256xf32>
    %c5_37 = arith.constant 5 : index
    %c0_38 = arith.constant 0 : index
    %c0_39 = arith.constant 0 : index
    %53 = vector.load %arg4[%c5_37, %c0_38, %c0_39] : memref<9x32x32xf32, #tpu.memory_space<vmem>>, vector<1x32x32xf32>
    %54 = vector.shape_cast %53 : vector<1x32x32xf32> to vector<32x32xf32>
    %cst_40 = arith.constant dense<0.000000e+00> : vector<32x256xf32>
    %55 = tpu.matmul %54, %52, %cst_40 {dimension_numbers = #tpu.dot_dimension_numbers<[1], [0], [0], [1], [0, 0, 1, 1], [], []>} : vector<32x32xf32>, vector<32x256xf32>, vector<32x256xf32> -> vector<32x256xf32>
    %56 = arith.addf %47, %55 : vector<32x256xf32>
    %c241_i32 = arith.constant 241 : i32
    %57 = tpu.dynamic_rotate %8 by %c241_i32 dim 1 : vector<32x256xf32>, i32 -> vector<32x256xf32>
    %c6 = arith.constant 6 : index
    %c0_41 = arith.constant 0 : index
    %c0_42 = arith.constant 0 : index
    %58 = vector.load %arg7[%c6, %c0_41, %c0_42] : memref<9x1x256xf32, #tpu.memory_space<vmem>>, vector<1x1x256xf32>
    %59 = vector.shape_cast %58 : vector<1x1x256xf32> to vector<1x256xf32>
    %60 = vector.broadcast %59 : vector<1x256xf32> to vector<32x256xf32>
    %61 = arith.mulf %57, %60 : vector<32x256xf32>
    %c6_43 = arith.constant 6 : index
    %c0_44 = arith.constant 0 : index
    %c0_45 = arith.constant 0 : index
    %62 = vector.load %arg4[%c6_43, %c0_44, %c0_45] : memref<9x32x32xf32, #tpu.memory_space<vmem>>, vector<1x32x32xf32>
    %63 = vector.shape_cast %62 : vector<1x32x32xf32> to vector<32x32xf32>
    %cst_46 = arith.constant dense<0.000000e+00> : vector<32x256xf32>
    %64 = tpu.matmul %63, %61, %cst_46 {dimension_numbers = #tpu.dot_dimension_numbers<[1], [0], [0], [1], [0, 0, 1, 1], [], []>} : vector<32x32xf32>, vector<32x256xf32>, vector<32x256xf32> -> vector<32x256xf32>
    %65 = arith.addf %56, %64 : vector<32x256xf32>
    %c240_i32 = arith.constant 240 : i32
    %66 = tpu.dynamic_rotate %8 by %c240_i32 dim 1 : vector<32x256xf32>, i32 -> vector<32x256xf32>
    %c7 = arith.constant 7 : index
    %c0_47 = arith.constant 0 : index
    %c0_48 = arith.constant 0 : index
    %67 = vector.load %arg7[%c7, %c0_47, %c0_48] : memref<9x1x256xf32, #tpu.memory_space<vmem>>, vector<1x1x256xf32>
    %68 = vector.shape_cast %67 : vector<1x1x256xf32> to vector<1x256xf32>
    %69 = vector.broadcast %68 : vector<1x256xf32> to vector<32x256xf32>
    %70 = arith.mulf %66, %69 : vector<32x256xf32>
    %c7_49 = arith.constant 7 : index
    %c0_50 = arith.constant 0 : index
    %c0_51 = arith.constant 0 : index
    %71 = vector.load %arg4[%c7_49, %c0_50, %c0_51] : memref<9x32x32xf32, #tpu.memory_space<vmem>>, vector<1x32x32xf32>
    %72 = vector.shape_cast %71 : vector<1x32x32xf32> to vector<32x32xf32>
    %cst_52 = arith.constant dense<0.000000e+00> : vector<32x256xf32>
    %73 = tpu.matmul %72, %70, %cst_52 {dimension_numbers = #tpu.dot_dimension_numbers<[1], [0], [0], [1], [0, 0, 1, 1], [], []>} : vector<32x32xf32>, vector<32x256xf32>, vector<32x256xf32> -> vector<32x256xf32>
    %74 = arith.addf %65, %73 : vector<32x256xf32>
    %c239_i32 = arith.constant 239 : i32
    %75 = tpu.dynamic_rotate %8 by %c239_i32 dim 1 : vector<32x256xf32>, i32 -> vector<32x256xf32>
    %c8 = arith.constant 8 : index
    %c0_53 = arith.constant 0 : index
    %c0_54 = arith.constant 0 : index
    %76 = vector.load %arg7[%c8, %c0_53, %c0_54] : memref<9x1x256xf32, #tpu.memory_space<vmem>>, vector<1x1x256xf32>
    %77 = vector.shape_cast %76 : vector<1x1x256xf32> to vector<1x256xf32>
    %78 = vector.broadcast %77 : vector<1x256xf32> to vector<32x256xf32>
    %79 = arith.mulf %75, %78 : vector<32x256xf32>
    %c8_55 = arith.constant 8 : index
    %c0_56 = arith.constant 0 : index
    %c0_57 = arith.constant 0 : index
    %80 = vector.load %arg4[%c8_55, %c0_56, %c0_57] : memref<9x32x32xf32, #tpu.memory_space<vmem>>, vector<1x32x32xf32>
    %81 = vector.shape_cast %80 : vector<1x32x32xf32> to vector<32x32xf32>
    %cst_58 = arith.constant dense<0.000000e+00> : vector<32x256xf32>
    %82 = tpu.matmul %81, %79, %cst_58 {dimension_numbers = #tpu.dot_dimension_numbers<[1], [0], [0], [1], [0, 0, 1, 1], [], []>} : vector<32x32xf32>, vector<32x256xf32>, vector<32x256xf32> -> vector<32x256xf32>
    %83 = arith.addf %74, %82 : vector<32x256xf32>
    %c0_59 = arith.constant 0 : index
    %c0_60 = arith.constant 0 : index
    %84 = vector.load %arg5[%c0_59, %c0_60] : memref<32x1xf32, #tpu.memory_space<vmem>>, vector<32x1xf32>
    %85 = vector.broadcast %84 : vector<32x1xf32> to vector<32x256xf32>
    %86 = arith.addf %83, %85 : vector<32x256xf32>
    %c0_61 = arith.constant 0 : index
    %c0_62 = arith.constant 0 : index
    %87 = vector.load %arg6[%c0_61, %c0_62] : memref<32x32xf32, #tpu.memory_space<vmem>>, vector<32x32xf32>
    %88 = arith.mulf %86, %86 : vector<32x256xf32>
    %cst_63 = arith.constant dense<0.000000e+00> : vector<32x256xf32>
    %89 = tpu.matmul %87, %88, %cst_63 {dimension_numbers = #tpu.dot_dimension_numbers<[1], [0], [0], [1], [0, 0, 1, 1], [], []>} : vector<32x32xf32>, vector<32x256xf32>, vector<32x256xf32> -> vector<32x256xf32>
    %cst_64 = arith.constant 2.000000e-05 : f32
    %90 = vector.broadcast %cst_64 : f32 to vector<32x256xf32>
    %91 = arith.mulf %90, %89 : vector<32x256xf32>
    %cst_65 = arith.constant 1.000000e+00 : f32
    %92 = vector.broadcast %cst_65 : f32 to vector<32x256xf32>
    %93 = arith.addf %92, %91 : vector<32x256xf32>
    %94 = math.rsqrt %93 : vector<32x256xf32>
    %95 = math.sqrt %94 : vector<32x256xf32>
    %96 = arith.mulf %94, %95 : vector<32x256xf32>
    %97 = arith.mulf %86, %96 : vector<32x256xf32>
    %c0_66 = arith.constant 0 : index
    %c0_67 = arith.constant 0 : index
    %98 = vector.load %arg8[%c0_66, %c0_67] : memref<1x256xf32, #tpu.memory_space<vmem>>, vector<1x256xf32>
    %99 = vector.broadcast %98 : vector<1x256xf32> to vector<32x256xf32>
    %100 = arith.mulf %97, %99 : vector<32x256xf32>
    %c0_68 = arith.constant 0 : index
    %c0_69 = arith.constant 0 : index
    %c0_70 = arith.constant 0 : index
    %101 = vector.load %arg9[%c0_68, %c0_69, %c0_70] : memref<1x32x256xf32, #tpu.memory_space<vmem>>, vector<1x32x256xf32>
    %102 = vector.shape_cast %101 : vector<1x32x256xf32> to vector<32x256xf32>
    %103 = vector.shape_cast %100 : vector<32x256xf32> to vector<1x32x256xf32>
    tpu.vector_store %arg9[%c0_68, %c0_69, %c0_70], %103 {strides = array<i32>} : memref<1x32x256xf32, #tpu.memory_space<vmem>>, vector<1x32x256xf32>,
    return
  }
  func.func @transform_0(%arg0: i32) -> (i32, i32, i32) {
    %c0_i32 = arith.constant 0 : i32
    %c0_i32_0 = arith.constant 0 : i32
    %c0_i32_1 = arith.constant 0 : i32
    return %arg0, %c0_i32, %c0_i32_0 : i32, i32, i32
  }
  func.func @transform_1(%arg0: i32) -> (i32, i32) {
    %c0_i32 = arith.constant 0 : i32
    %c0_i32_0 = arith.constant 0 : i32
    %c0_i32_1 = arith.constant 0 : i32
    return %c0_i32, %c0_i32_0 : i32, i32
  }
  func.func @transform_2(%arg0: i32) -> (i32, i32) {
    %c0_i32 = arith.constant 0 : i32
    %c0_i32_0 = arith.constant 0 : i32
    %c0_i32_1 = arith.constant 0 : i32
    return %c0_i32, %c0_i32_0 : i32, i32
  }
  func.func @transform_3(%arg0: i32) -> (i32, i32, i32) {
    %c0_i32 = arith.constant 0 : i32
    %c0_i32_0 = arith.constant 0 : i32
    %c0_i32_1 = arith.constant 0 : i32
    %c0_i32_2 = arith.constant 0 : i32
    return %c0_i32, %c0_i32_0, %c0_i32_1 : i32, i32, i32
  }
  func.func @transform_4(%arg0: i32) -> (i32, i32) {
    %c0_i32 = arith.constant 0 : i32
    %c0_i32_0 = arith.constant 0 : i32
    %c0_i32_1 = arith.constant 0 : i32
    return %c0_i32, %c0_i32_0 : i32, i32
  }
  func.func @transform_5(%arg0: i32) -> (i32, i32) {
    %c0_i32 = arith.constant 0 : i32
    %c0_i32_0 = arith.constant 0 : i32
    %c0_i32_1 = arith.constant 0 : i32
    return %c0_i32, %c0_i32_0 : i32, i32
  }
  func.func @transform_6(%arg0: i32) -> (i32, i32, i32) {
    %c0_i32 = arith.constant 0 : i32
    %c0_i32_0 = arith.constant 0 : i32
    %c0_i32_1 = arith.constant 0 : i32
    %c0_i32_2 = arith.constant 0 : i32
    return %c0_i32, %c0_i32_0, %c0_i32_1 : i32, i32, i32
  }
  func.func @transform_7(%arg0: i32) -> (i32, i32) {
    %c0_i32 = arith.constant 0 : i32
    %c0_i32_0 = arith.constant 0 : i32
    %c0_i32_1 = arith.constant 0 : i32
    return %c0_i32, %c0_i32_0 : i32, i32
  }
  func.func @transform_8(%arg0: i32) -> (i32, i32, i32) {
    %c0_i32 = arith.constant 0 : i32
    %c0_i32_0 = arith.constant 0 : i32
    %c0_i32_1 = arith.constant 0 : i32
    return %arg0, %c0_i32, %c0_i32_0 : i32, i32, i32
  }
}

</mosaic_0001>

<llo_original>
// kernel: tpu_custom_call.1
$region0: #{tpu_custom_call.1}
  #allocation0 [shape = 'u32[]', space=smem, size = 0x4, offset = 0x4, fixed_abs, tag = 'smem constant byte address 0x4 - core index']
  #allocation1 [shape = 'u32[144,128]{1,0:T(1,128)}', space=vmem, size = 0x12000, scoped, tag = 'internal scratch']
  %s0 = inlined_call_operand.vmem [shape: f32[2,27,256], index: 0, kind: input, shape index: {}]
  %s1 = inlined_call_operand.hbm [shape: f32[32,27], index: 1, kind: input, shape index: {}]
  %s2 = inlined_call_operand.vmem [shape: f32[32,1], index: 2, kind: input, shape index: {}]
  %s3 = inlined_call_operand.vmem [shape: f32[9,32,32], index: 3, kind: input, shape index: {}]
  %s4 = inlined_call_operand.vmem [shape: f32[32,1], index: 4, kind: input, shape index: {}]
  %s5 = inlined_call_operand.vmem [shape: f32[32,32], index: 5, kind: input, shape index: {}]
  %s6 = inlined_call_operand.hbm [shape: f32[9,1,256], index: 6, kind: input, shape index: {}]
  %s7 = inlined_call_operand.vmem [shape: f32[1,256], index: 7, kind: input, shape index: {}]
  %s8 = inlined_call_operand.hbm [shape: f32[2,32,256], index: 8, kind: output, shape index: {}]
  %s9 = sld [smem:[#allocation0]]
  $region73: #{tpu_custom_call.1} parent=0
    _
  %s11 = ssub.s32 1, %s9
  %s12 = scalar_select 0, %s11, %s9
  $region1: #{tpu_custom_call.1} parent=0
    #allocation2 [shape = 'u8[16384]{0}', space=vmem, size = 0x4000, scoped, tag = 'input window, operand 1, single buffered']
    #allocation3 [shape = 's32[2]{0}', space=sflag, size = 0x8, scoped, tag = 'scoped memory for tpu_custom_call.1']
    #allocation4 [shape = 's32[2]{0}', space=sflag, size = 0x8, scoped, tag = 'scoped memory for tpu_custom_call.1']
    #allocation5 [shape = 'u8[9216]{0}', space=vmem, size = 0x2400, scoped, tag = 'input window, operand 6, single buffered']
    #allocation6 [shape = 's32[1]{0}', space=sflag, size = 0x4, scoped, tag = 'scoped memory for tpu_custom_call.1']
    #allocation7 [shape = 'u8[65536]{0}', space=vmem, size = 0x10000, scoped, tag = 'output window, operand 0']
    %13 = vsyncpa [#allocation3], 0
    %14 = vsyncpa [#allocation6], 0
    %15 = vsyncpa [#allocation4], 0
    %s16 = scalar_lea.sflag [#allocation4], 1
    %17 = vsyncpa %s16, 0
    loop: start=0, step=1, limit=4
    $region2: #{tpu_custom_call.1} parent=1 // loop_pre_header
      _
    $region3: #{tpu_custom_call.1} parent=1 // loop_header
      %s19 = sphi 0, %s23
      %p20 = scmp.ge.s32.totalorder %s19, 4
      %s29 = sphi 0, %s31
      %s32 = sphi 0, %s29
      %s33 = sphi 0, %s32
      %s49 = sphi 0, %s33
      %s53 = sphi 0, %s53
      %s55 = sphi 0, %s53
      %s56 = sphi 0, %s55
      %s70 = sphi 0, %s56
      %s74 = sphi 0, %s74
      %s76 = sphi 0, %s74
      %s77 = sphi 0, %s76
      %s91 = sphi 0, %s77
      %s95 = sphi 0, %s95
      %s97 = sphi 0, %s95
      %s98 = sphi 0, %s97
      %s112 = sphi 0, %s98
      %s116 = sphi 0, %s116
      %s118 = sphi 0, %s116
      %s119 = sphi 0, %s118
      %s133 = sphi 0, %s119
      %s137 = sphi 0, %s137
      %s139 = sphi 0, %s137
      %s140 = sphi 0, %s139
      %s154 = sphi 0, %s140
      %s158 = sphi 0, %s158
      %s160 = sphi 0, %s158
      %s161 = sphi 0, %s160
      %s175 = sphi 0, %s161
      %s179 = sphi 0, %s179
      %s181 = sphi 0, %s179
      %s182 = sphi 0, %s181
      %s196 = sphi 0, %s182
      %s202 = sphi 0, %s204
      %s205 = sphi 0, %s202
      %s206 = sphi 0, %s205
      %s222 = sphi 0, %s206
    $region4: #{tpu_custom_call.1} parent=1 // loop_header_branch
      %22 = sbr.rel (%p20) target = $region8
    $region5: #{tpu_custom_call.1} parent=1 // loop_body
      %s24 = ssub.s32 %s19, 1
      %s25 = ssub.s32 %s19, 2
      %s26 = sadd.s32 %s19, 1
      %s27 = ssub.s32 %s19, %s26
      %p28 = scmp.eq.s32.totalorder %s27, 0
      %s30 = sadd.s32 %s29, 1
      %s31 = scalar_select %p28, %s29, %s30
      %p34 = pneg %p28
      %p35 = scmp.eq.s32.totalorder %s19, 1
      %p36 = por %p34, %p35
      %p37 = scmp.ne.s32.totalorder %s29, %s32
      %p38 = scmp.eq.s32.totalorder %s19, 0
      %p39 = por %p37, %p38
      %p40 = scmp.ne.s32.totalorder %s29, %s32
      %p41 = scmp.eq.s32.totalorder %s24, 1
      %p42 = por %p40, %p41
      %p43 = scmp.ne.s32.totalorder %s32, %s33
      %p44 = scmp.eq.s32.totalorder %s24, 0
      %p45 = por %p43, %p44
      %p46 = scmp.ne.s32.totalorder %s32, %s33
      %p47 = scmp.eq.s32.totalorder %s25, 1
      %p48 = por %p46, %p47
      %p50 = scmp.ne.s32.totalorder %s33, %s49
      %p51 = scmp.eq.s32.totalorder %s25, 0
      %p52 = por %p50, %p51
      %s54 = sadd.s32 %s53, 1
      %p57 = scmp.eq.s32.totalorder %s19, 1
      %p58 = scmp.ne.s32.totalorder %s53, %s55
      %p59 = scmp.eq.s32.totalorder %s19, 0
      %p60 = por %p58, %p59
      %p61 = scmp.ne.s32.totalorder %s53, %s55
      %p62 = scmp.eq.s32.totalorder %s24, 1
      %p63 = por %p61, %p62
      %p64 = scmp.ne.s32.totalorder %s55, %s56
      %p65 = scmp.eq.s32.totalorder %s24, 0
      %p66 = por %p64, %p65
      %p67 = scmp.ne.s32.totalorder %s55, %s56
      %p68 = scmp.eq.s32.totalorder %s25, 1
      %p69 = por %p67, %p68
      %p71 = scmp.ne.s32.totalorder %s56, %s70
      %p72 = scmp.eq.s32.totalorder %s25, 0
      %p73 = por %p71, %p72
      %s75 = sadd.s32 %s74, 1
      %p78 = scmp.eq.s32.totalorder %s19, 1
      %p79 = scmp.ne.s32.totalorder %s74, %s76
      %p80 = scmp.eq.s32.totalorder %s19, 0
      %p81 = por %p79, %p80
      %p82 = scmp.ne.s32.totalorder %s74, %s76
      %p83 = scmp.eq.s32.totalorder %s24, 1
      %p84 = por %p82, %p83
      %p85 = scmp.ne.s32.totalorder %s76, %s77
      %p86 = scmp.eq.s32.totalorder %s24, 0
      %p87 = por %p85, %p86
      %p88 = scmp.ne.s32.totalorder %s76, %s77
      %p89 = scmp.eq.s32.totalorder %s25, 1
      %p90 = por %p88, %p89
      %p92 = scmp.ne.s32.totalorder %s77, %s91
      %p93 = scmp.eq.s32.totalorder %s25, 0
      %p94 = por %p92, %p93
      %s96 = sadd.s32 %s95, 1
      %p99 = scmp.eq.s32.totalorder %s19, 1
      %p100 = scmp.ne.s32.totalorder %s95, %s97
      %p101 = scmp.eq.s32.totalorder %s19, 0
      %p102 = por %p100, %p101
      %p103 = scmp.ne.s32.totalorder %s95, %s97
      %p104 = scmp.eq.s32.totalorder %s24, 1
      %p105 = por %p103, %p104
      %p106 = scmp.ne.s32.totalorder %s97, %s98
      %p107 = scmp.eq.s32.totalorder %s24, 0
      %p108 = por %p106, %p107
      %p109 = scmp.ne.s32.totalorder %s97, %s98
      %p110 = scmp.eq.s32.totalorder %s25, 1
      %p111 = por %p109, %p110
      %p113 = scmp.ne.s32.totalorder %s98, %s112
      %p114 = scmp.eq.s32.totalorder %s25, 0
      %p115 = por %p113, %p114
      %s117 = sadd.s32 %s116, 1
      %p120 = scmp.eq.s32.totalorder %s19, 1
      %p121 = scmp.ne.s32.totalorder %s116, %s118
      %p122 = scmp.eq.s32.totalorder %s19, 0
      %p123 = por %p121, %p122
      %p124 = scmp.ne.s32.totalorder %s116, %s118
      %p125 = scmp.eq.s32.totalorder %s24, 1
      %p126 = por %p124, %p125
      %p127 = scmp.ne.s32.totalorder %s118, %s119
      %p128 = scmp.eq.s32.totalorder %s24, 0
      %p129 = por %p127, %p128
      %p130 = scmp.ne.s32.totalorder %s118, %s119
      %p131 = scmp.eq.s32.totalorder %s25, 1
      %p132 = por %p130, %p131
      %p134 = scmp.ne.s32.totalorder %s119, %s133
      %p135 = scmp.eq.s32.totalorder %s25, 0
      %p136 = por %p134, %p135
      %s138 = sadd.s32 %s137, 1
      %p141 = scmp.eq.s32.totalorder %s19, 1
      %p142 = scmp.ne.s32.totalorder %s137, %s139
      %p143 = scmp.eq.s32.totalorder %s19, 0
      %p144 = por %p142, %p143
      %p145 = scmp.ne.s32.totalorder %s137, %s139
      %p146 = scmp.eq.s32.totalorder %s24, 1
      %p147 = por %p145, %p146
      %p148 = scmp.ne.s32.totalorder %s139, %s140
      %p149 = scmp.eq.s32.totalorder %s24, 0
      %p150 = por %p148, %p149
      %p151 = scmp.ne.s32.totalorder %s139, %s140
      %p152 = scmp.eq.s32.totalorder %s25, 1
      %p153 = por %p151, %p152
      %p155 = scmp.ne.s32.totalorder %s140, %s154
      %p156 = scmp.eq.s32.totalorder %s25, 0
      %p157 = por %p155, %p156
      %s159 = sadd.s32 %s158, 1
      %p162 = scmp.eq.s32.totalorder %s19, 1
      %p163 = scmp.ne.s32.totalorder %s158, %s160
      %p164 = scmp.eq.s32.totalorder %s19, 0
      %p165 = por %p163, %p164
      %p166 = scmp.ne.s32.totalorder %s158, %s160
      %p167 = scmp.eq.s32.totalorder %s24, 1
      %p168 = por %p166, %p167
      %p169 = scmp.ne.s32.totalorder %s160, %s161
      %p170 = scmp.eq.s32.totalorder %s24, 0
      %p171 = por %p169, %p170
      %p172 = scmp.ne.s32.totalorder %s160, %s161
      %p173 = scmp.eq.s32.totalorder %s25, 1
      %p174 = por %p172, %p173
      %p176 = scmp.ne.s32.totalorder %s161, %s175
      %p177 = scmp.eq.s32.totalorder %s25, 0
      %p178 = por %p176, %p177
      %s180 = sadd.s32 %s179, 1
      %p183 = scmp.eq.s32.totalorder %s19, 1
      %p184 = scmp.ne.s32.totalorder %s179, %s181
      %p185 = scmp.eq.s32.totalorder %s19, 0
      %p186 = por %p184, %p185
      %p187 = scmp.ne.s32.totalorder %s179, %s181
      %p188 = scmp.eq.s32.totalorder %s24, 1
      %p189 = por %p187, %p188
      %p190 = scmp.ne.s32.totalorder %s181, %s182
      %p191 = scmp.eq.s32.totalorder %s24, 0
      %p192 = por %p190, %p191
      %p193 = scmp.ne.s32.totalorder %s181, %s182
      %p194 = scmp.eq.s32.totalorder %s25, 1
      %p195 = por %p193, %p194
      %p197 = scmp.ne.s32.totalorder %s182, %s196
      %p198 = scmp.eq.s32.totalorder %s25, 0
      %p199 = por %p197, %p198
      %s200 = ssub.s32 %s19, %s26
      %p201 = scmp.eq.s32.totalorder %s200, 0
      %s203 = sadd.s32 %s202, 1
      %s204 = scalar_select %p201, %s202, %s203
      %p207 = pneg %p201
      %p208 = scmp.eq.s32.totalorder %s19, 1
      %p209 = por %p207, %p208
      %p210 = scmp.ne.s32.totalorder %s202, %s205
      %p211 = scmp.eq.s32.totalorder %s19, 0
      %p212 = por %p210, %p211
      %p213 = scmp.ne.s32.totalorder %s202, %s205
      %p214 = scmp.eq.s32.totalorder %s24, 1
      %p215 = por %p213, %p214
      %p216 = scmp.ne.s32.totalorder %s205, %s206
      %p217 = scmp.eq.s32.totalorder %s24, 0
      %p218 = por %p216, %p217
      %p219 = scmp.ne.s32.totalorder %s205, %s206
      %p220 = scmp.eq.s32.totalorder %s25, 1
      %p221 = por %p219, %p220
      %p223 = scmp.ne.s32.totalorder %s206, %s222
      %p224 = scmp.eq.s32.totalorder %s25, 0
      %p225 = por %p223, %p224
      %p226 = scmp.le.s32.totalorder 1, %s19
      %p227 = scmp.lt.s32.totalorder %s19, 3
      %p228 = pnand %p226, %p227
      %p229 = pneg %p228
      // Predicated region
      $region9: #{tpu_custom_call.1} parent=5 // pred_check
        _
      $region10: #{tpu_custom_call.1} parent=5 // pred_check_branch
        %231 = sbr.rel (%p228) target = $region12
      $region11: #{tpu_custom_call.1} parent=5 // pred_region
        %s232 = ssub.s32 %s19, 1
        // Predicated region
        $region13: #{tpu_custom_call.1} parent=11 // pred_check
          %p233 = pneg %p66
        $region14: #{tpu_custom_call.1} parent=11 // pred_check_branch
          %235 = sbr.rel (%p233) target = $region16
        $region15: #{tpu_custom_call.1} parent=11 // pred_region
          %s237 = ssub.s32 512, 512
          %238 = vsyncadd [#allocation3], %s237
          %s239 = sshll.u32 [#allocation2], 4
          %s240 = int_to_ptr.vmem [resolvable:$true] %s239
          %245 = dma.hbm_to_vmem [thread:$0]  %s1, 512, %s240, [#allocation3], 128, 128, 8
        $region16: #{tpu_custom_call.1} parent=11 // pred_fallthru
          _
        // Predicated region
        $region17: #{tpu_custom_call.1} parent=11 // pred_check
          %p246 = pneg %p87
        $region18: #{tpu_custom_call.1} parent=11 // pred_check_branch
          %248 = sbr.rel (%p246) target = $region20
        $region19: #{tpu_custom_call.1} parent=11 // pred_region
          _
        $region20: #{tpu_custom_call.1} parent=11 // pred_fallthru
          _
        // Predicated region
        $region21: #{tpu_custom_call.1} parent=11 // pred_check
          %p249 = pneg %p108
        $region22: #{tpu_custom_call.1} parent=11 // pred_check_branch
          %251 = sbr.rel (%p249) target = $region24
        $region23: #{tpu_custom_call.1} parent=11 // pred_region
          _
        $region24: #{tpu_custom_call.1} parent=11 // pred_fallthru
          _
        // Predicated region
        $region25: #{tpu_custom_call.1} parent=11 // pred_check
          %p252 = pneg %p129
        $region26: #{tpu_custom_call.1} parent=11 // pred_check_branch
          %254 = sbr.rel (%p252) target = $region28
        $region27: #{tpu_custom_call.1} parent=11 // pred_region
          _
        $region28: #{tpu_custom_call.1} parent=11 // pred_fallthru
          _
        // Predicated region
        $region29: #{tpu_custom_call.1} parent=11 // pred_check
          %p255 = pneg %p150
        $region30: #{tpu_custom_call.1} parent=11 // pred_check_branch
          %257 = sbr.rel (%p255) target = $region32
        $region31: #{tpu_custom_call.1} parent=11 // pred_region
          _
        $region32: #{tpu_custom_call.1} parent=11 // pred_fallthru
          _
        // Predicated region
        $region33: #{tpu_custom_call.1} parent=11 // pred_check
          %p258 = pneg %p171
        $region34: #{tpu_custom_call.1} parent=11 // pred_check_branch
          %260 = sbr.rel (%p258) target = $region36
        $region35: #{tpu_custom_call.1} parent=11 // pred_region
          %s262 = ssub.s32 288, 288
          %263 = vsyncadd [#allocation6], %s262
          %s264 = sshll.u32 [#allocation5], 4
          %s265 = int_to_ptr.vmem [resolvable:$true] %s264
          %270 = dma.hbm_to_vmem [thread:$0]  %s6, 288, %s265, [#allocation6], 32, 32, 2
        $region36: #{tpu_custom_call.1} parent=11 // pred_fallthru
          _
        // Predicated region
        $region37: #{tpu_custom_call.1} parent=11 // pred_check
          %p271 = pneg %p192
        $region38: #{tpu_custom_call.1} parent=11 // pred_check_branch
          %273 = sbr.rel (%p271) target = $region40
        $region39: #{tpu_custom_call.1} parent=11 // pred_region
          _
        $region40: #{tpu_custom_call.1} parent=11 // pred_fallthru
          _
      $region12: #{tpu_custom_call.1} parent=5 // pred_fallthru
        _
      %p274 = scmp.lt.s32.totalorder %s19, 2
      // Predicated region
      $region41: #{tpu_custom_call.1} parent=5 // pred_check
        %p275 = pneg %p274
      $region42: #{tpu_custom_call.1} parent=5 // pred_check_branch
        %277 = sbr.rel (%p275) target = $region44
      $region43: #{tpu_custom_call.1} parent=5 // pred_region
        // Predicated region
        $region45: #{tpu_custom_call.1} parent=43 // pred_check
          %p278 = pneg %p39
        $region46: #{tpu_custom_call.1} parent=43 // pred_check_branch
          %280 = sbr.rel (%p278) target = $region48
        $region47: #{tpu_custom_call.1} parent=43 // pred_region
          %p281 = scmp.lt.s32.totalorder %s19, 1
          %s282 = scalar_select %p281, %s19, 1
          %s283 = smul.addr %s282, 8
          %s284 = smul.addr %s283, 8
          %s285 = scalar_lea.vmem %s0, %s284
        $region48: #{tpu_custom_call.1} parent=43 // pred_fallthru
          _
      $region44: #{tpu_custom_call.1} parent=5 // pred_fallthru
        _
      %p286 = scmp.le.s32.totalorder 1, %s19
      %p287 = scmp.lt.s32.totalorder %s19, 3
      %p288 = pnand %p286, %p287
      %p289 = pneg %p288
      // Predicated region
      $region49: #{tpu_custom_call.1} parent=5 // pred_check
        _
      $region50: #{tpu_custom_call.1} parent=5 // pred_check_branch
        %291 = sbr.rel (%p288) target = $region52
      $region51: #{tpu_custom_call.1} parent=5 // pred_region
        %s292 = ssub.s32 %s19, 1
        // Predicated region
        $region53: #{tpu_custom_call.1} parent=51 // pred_check
          %p293 = pneg %p66
        $region54: #{tpu_custom_call.1} parent=51 // pred_check_branch
          %295 = sbr.rel (%p293) target = $region56
        $region55: #{tpu_custom_call.1} parent=51 // pred_region
          %296 = dma.done [#allocation3], 512
        $region56: #{tpu_custom_call.1} parent=51 // pred_fallthru
          _
        // Predicated region
        $region57: #{tpu_custom_call.1} parent=51 // pred_check
          %p297 = pneg %p171
        $region58: #{tpu_custom_call.1} parent=51 // pred_check_branch
          %299 = sbr.rel (%p297) target = $region60
        $region59: #{tpu_custom_call.1} parent=51 // pred_region
          %300 = dma.done [#allocation6], 288
        $region60: #{tpu_custom_call.1} parent=51 // pred_fallthru
          _
        %p301 = scmp.lt.s32.totalorder %s24, 1
        %s302 = scalar_select %p301, %s24, 1
        %s303 = smul.addr %s302, 8
        %s304 = smul.addr %s303, 8
        %s305 = scalar_lea.vmem %s0, %s304
        %p306 = pneg %p45
        %p307 = pneg %p42
        %p308 = pneg %p66
        %p309 = pneg %p63
        %p310 = pneg %p87
        %p311 = pneg %p84
        %p312 = pneg %p108
        %p313 = pneg %p105
        %p314 = pneg %p129
        %p315 = pneg %p126
        %p316 = pneg %p150
        %p317 = pneg %p147
        %p318 = pneg %p171
        %p319 = pneg %p168
        %p320 = pneg %p192
        %p321 = pneg %p189
        %p322 = pneg %p218
        %p323 = pneg %p215
        %s324 = sand.u32 %s205, 1
        %s325 = scalar_lea.sflag [#allocation4], %s324
        %s326 = sand.u32 %s205, 1
        %s327 = smul.addr %s326, 64
        %s328 = scalar_lea.vmem [#allocation7], %s327
        %p329 = scmp.lt.s32.totalorder %s24, 1
        %s330 = scalar_select %p329, %s24, 1
        %s331 = smul.addr %s330, 8
        %s332 = smul.addr %s331, 8
        %s333 = scalar_lea.vmem %s0, %s332
        %v334 = vld [vmem:[#allocation2] sm:$0xff]
        %v335 = vld [vmem:[#allocation2 + $0x8] sm:$0xff]
        %v336 = vld [vmem:[#allocation2 + $0x10] sm:$0xff]
        %v337 = vld [vmem:[#allocation2 + $0x18] sm:$0xff]
        %v338 = vld [vmem:[%s333] sm:$0xff]
        %v339 = vld [vmem:[%s333 + $0x8] sm:$0xff]
        %v340 = vld [vmem:[%s333 + $0x10] sm:$0xff]
        %v341 = vld [vmem:[%s333 + $0x18] sm:$0xff]
        %v342 = vld [vmem:[%s333 + $0x20] sm:$0xff]
        %v343 = vld [vmem:[%s333 + $0x28] sm:$0xff]
        %v344 = vld [vmem:[%s333 + $0x30] sm:$0x7]
        %v345 = vld [vmem:[%s333 + $0x38] sm:$0x7]
        %v346 = vld [vmem:[%s2] sm:$0xff]
        %v347 = vld [vmem:[%s2 + $0x8] sm:$0xff]
        %v348 = vld [vmem:[%s2 + $0x10] sm:$0xff]
        %v349 = vld [vmem:[%s2 + $0x18] sm:$0xff]
        %351 = vset.pattern.permute.xlu0 0
        %352 = vperm.xlu0 %351, %v346
        %v353 = vpop.permute.xlu0 %352
        %356 = vset.pattern.permute.xlu0 0
        %357 = vperm.xlu0 %356, %v347
        %v358 = vpop.permute.xlu0 %357
        %361 = vset.pattern.permute.xlu0 0
        %362 = vperm.xlu0 %361, %v348
        %v363 = vpop.permute.xlu0 %362
        %366 = vset.pattern.permute.xlu0 0
        %367 = vperm.xlu0 %366, %v349
        %v368 = vpop.permute.xlu0 %367
        %vm370 = vcmask 220160
        %v372 = vsel %vm370, %v334, 0
        %v375 = vsel %vm370, %v335, 0
        %v378 = vsel %vm370, %v336, 0
        %v381 = vsel %vm370, %v337, 0
        %vm383 = vcmask 1042432
        %v385 = vsel %vm383, %v344, 0
        %v388 = vsel %vm383, %v345, 0
        %390 = vmatprep.subr.mxu0 %v339
        %391 = vmatpush1.msra.mxu0 %v338
        %392 = vmatprep.subr.mxu0 %v341
        %393 = vmatpush1.msra.mxu0 %v340
        %394 = vmatprep.subr.mxu0 %v343
        %395 = vmatpush1.msra.mxu0 %v342
        %396 = vmatprep.subr.mxu0 %v388
        %397 = vmatpush1.msra.mxu0 %v385
        %398 = vmatprep.subr.mxu0 0.0
        %399 = vmatpush1.msra.mxu0 0.0
        %400 = vmatprep.subr.mxu0 0.0
        %401 = vmatpush1.msra.mxu0 0.0
        %402 = vmatprep.subr.mxu0 0.0
        %403 = vmatpush1.msra.mxu0 0.0
        %404 = vmatprep.subr.mxu0 0.0
        %405 = vmatpush1.msra.mxu0 0.0
        %406 = vmatprep.subr.mxu0 0.0
        %407 = vmatpush1.msra.mxu0 0.0
        %408 = vmatprep.subr.mxu0 0.0
        %409 = vmatpush1.msra.mxu0 0.0
        %410 = vmatprep.subr.mxu0 0.0
        %411 = vmatpush1.msra.mxu0 0.0
        %412 = vmatprep.subr.mxu0 0.0
        %413 = vmatpush1.msra.mxu0 0.0
        %414 = vmatprep.subr.mxu0 0.0
        %415 = vmatpush1.msra.mxu0 0.0
        %416 = vmatprep.subr.mxu0 0.0
        %417 = vmatpush1.msra.mxu0 0.0
        %418 = vmatprep.subr.mxu0 0.0
        %419 = vmatpush1.msra.mxu0 0.0
        %420 = vmatprep.subr.mxu0 0.0
        %421 = vmatpush1.msra.mxu0 0.0
        %422 = vmatprep.subr.mxu0 0.0
        %423 = vmatpush1.msra.mxu0 0.0
        %424 = vmatprep.subr.mxu0 0.0
        %425 = vmatpush1.msra.mxu0 0.0
        %426 = vmatprep.subr.mxu0 0.0
        %427 = vmatpush1.msra.mxu0 0.0
        %428 = vmatprep.subr.mxu0 0.0
        %429 = vmatpush1.msra.mxu0 0.0
        %430 = vmatprep.subr.mxu0 0.0
        %431 = vmatpush1.msra.mxu0 0.0
        %432 = vmatprep.subr.mxu0 0.0
        %433 = vmatpush1.msra.mxu0 0.0
        %434 = vmatprep.subr.mxu0 0.0
        %435 = vmatpush1.msra.mxu0 0.0
        %436 = vmatprep.subr.mxu0 0.0
        %437 = vmatpush1.msra.mxu0 0.0
        %438 = vmatprep.subr.mxu0 0.0
        %439 = vmatpush1.msra.mxu0 0.0
        %440 = vmatprep.subr.mxu0 0.0
        %441 = vmatpush1.msra.mxu0 0.0
        %442 = vmatprep.subr.mxu0 0.0
        %443 = vmatpush1.msra.mxu0 0.0
        %444 = vmatprep.subr.mxu0 0.0
        %445 = vmatpush1.msra.mxu0 0.0
        %446 = vmatprep.subr.mxu0 0.0
        %447 = vmatpush1.msra.mxu0 0.0
        %448 = vmatprep.subr.mxu0 0.0
        %449 = vmatpush1.msra.mxu0 0.0
        %450 = vmatprep.subr.mxu0 0.0
        %451 = vmatpush1.msra.mxu0 0.0
        %452 = vmatprep.subr.mxu0 0.0
        %453 = vmatpush1.msra.mxu0 0.0
        %454 = vmatprep.mubr.f32.mxu0 0.0
        %455 = vmatmul.mubr.f32.gmra.mrb[0].mxu0 %v372
        %v456 = vpop.f32.mrb[0].mxu0
        %v457 = vadd.f32 %v353, %v456
        %v458 = vpop.f32.mrb[0].mxu0
        %v459 = vadd.f32 %v353, %v458
        %460 = vmatprep.mubr.f32.mxu0 0.0
        %461 = vmatmul.mubr.f32.gmra.mrb[0].mxu0 %v375
        %v462 = vpop.f32.mrb[0].mxu0
        %v463 = vadd.f32 %v358, %v462
        %v464 = vpop.f32.mrb[0].mxu0
        %v465 = vadd.f32 %v358, %v464
        %466 = vmatprep.mubr.f32.mxu0 0.0
        %467 = vmatmul.mubr.f32.gmra.mrb[0].mxu0 %v378
        %v468 = vpop.f32.mrb[0].mxu0
        %v469 = vadd.f32 %v363, %v468
        %v470 = vpop.f32.mrb[0].mxu0
        %v471 = vadd.f32 %v363, %v470
        %472 = vmatprep.mubr.f32.mxu0 0.0
        %473 = vmatmul.mubr.f32.gmra.mrb[0].mxu0 %v381
        %v474 = vpop.f32.mrb[0].mxu0
        %v475 = vadd.f32 %v368, %v474
        %v476 = vpop.f32.mrb[0].mxu0
        %v477 = vadd.f32 %v368, %v476
        %478 = vdwg.mxu0
        %v479 = vmax.f32 %v457, 0.0
        %v480 = vmax.f32 %v459, 0.0
        %v481 = vmax.f32 %v463, 0.0
        %v482 = vmax.f32 %v465, 0.0
        %v483 = vmax.f32 %v469, 0.0
        %v484 = vmax.f32 %v471, 0.0
        %v485 = vmax.f32 %v475, 0.0
        %v486 = vmax.f32 %v477, 0.0
        %487 = vrot.lane.b32.xlu0 %v479, 17
        %v488 = vpop.permute.xlu0 %487
        %489 = vrot.lane.b32.xlu0 %v481, 17
        %v490 = vpop.permute.xlu0 %489
        %491 = vrot.lane.b32.xlu0 %v483, 17
        %v492 = vpop.permute.xlu0 %491
        %493 = vrot.lane.b32.xlu0 %v485, 17
        %v494 = vpop.permute.xlu0 %493
        %495 = vrot.lane.b32.xlu0 %v480, 17
        %v496 = vpop.permute.xlu0 %495
        %497 = vrot.lane.b32.xlu0 %v482, 17
        %v498 = vpop.permute.xlu0 %497
        %499 = vrot.lane.b32.xlu0 %v484, 17
        %v500 = vpop.permute.xlu0 %499
        %501 = vrot.lane.b32.xlu0 %v486, 17
        %v502 = vpop.permute.xlu0 %501
        %v503 = vlaneseq
        %v504 = vand.u32 %v503, 127
        %vm505 = vcmp.lt.s32.totalorder %v504, 17
        %v506 = vsel %vm505, %v488, %v496
        %v507 = vsel %vm505, %v490, %v498
        %v508 = vsel %vm505, %v492, %v500
        %v509 = vsel %vm505, %v494, %v502
        %v510 = vsel %vm505, %v496, %v488
        %v511 = vsel %vm505, %v498, %v490
        %v512 = vsel %vm505, %v500, %v492
        %v513 = vsel %vm505, %v502, %v494
        %v514 = vld [vmem:[#allocation5] sm:$0x3]
        %v516 = vlaneseq
        %v517 = vshrl.u32 %v516, 7
        %v518 = vsub.s32 0, %v517
        %v519 = vrot.slane %v514, %v518
        %v520 = vlaneseq
        %v521 = vshrl.u32 %v520, 7
        %v522 = vsub.s32 1, %v521
        %v523 = vrot.slane %v514, %v522
        %v526 = vmul.f32 %v510, %v519
        %v527 = vmul.f32 %v506, %v523
        %v528 = vmul.f32 %v511, %v519
        %v529 = vmul.f32 %v507, %v523
        %v530 = vmul.f32 %v512, %v519
        %v531 = vmul.f32 %v508, %v523
        %v532 = vmul.f32 %v513, %v519
        %v533 = vmul.f32 %v509, %v523
        %v534 = vld [vmem:[%s3] sm:$0xff]
        %v535 = vld [vmem:[%s3 + $0x8] sm:$0xff]
        %v536 = vld [vmem:[%s3 + $0x10] sm:$0xff]
        %v537 = vld [vmem:[%s3 + $0x18] sm:$0xff]
        %538 = vrot.lane.b32.xlu0 %v479, 16
        %v539 = vpop.permute.xlu0 %538
        %540 = vrot.lane.b32.xlu0 %v481, 16
        %v541 = vpop.permute.xlu0 %540
        %542 = vrot.lane.b32.xlu0 %v483, 16
        %v543 = vpop.permute.xlu0 %542
        %544 = vrot.lane.b32.xlu0 %v485, 16
        %v545 = vpop.permute.xlu0 %544
        %546 = vrot.lane.b32.xlu0 %v480, 16
        %v547 = vpop.permute.xlu0 %546
        %548 = vrot.lane.b32.xlu0 %v482, 16
        %v549 = vpop.permute.xlu0 %548
        %550 = vrot.lane.b32.xlu0 %v484, 16
        %v551 = vpop.permute.xlu0 %550
        %552 = vrot.lane.b32.xlu0 %v486, 16
        %v553 = vpop.permute.xlu0 %552
        %vm554 = vcmp.lt.s32.totalorder %v504, 16
        %v555 = vsel %vm554, %v539, %v547
        %v556 = vsel %vm554, %v541, %v549
        %v557 = vsel %vm554, %v543, %v551
        %v558 = vsel %vm554, %v545, %v553
        %v559 = vsel %vm554, %v547, %v539
        %v560 = vsel %vm554, %v549, %v541
        %v561 = vsel %vm554, %v551, %v543
        %v562 = vsel %vm554, %v553, %v545
        %s563 = scalar_lea.vmem [#allocation5], 2
        %v564 = vld [vmem:[%s563] sm:$0x3]
        %v566 = vlaneseq
        %v567 = vshrl.u32 %v566, 7
        %v568 = vsub.s32 0, %v567
        %v569 = vrot.slane %v564, %v568
        %v570 = vlaneseq
        %v571 = vshrl.u32 %v570, 7
        %v572 = vsub.s32 1, %v571
        %v573 = vrot.slane %v564, %v572
        %v576 = vmul.f32 %v559, %v569
        %v577 = vmul.f32 %v555, %v573
        %v578 = vmul.f32 %v560, %v569
        %v579 = vmul.f32 %v556, %v573
        %v580 = vmul.f32 %v561, %v569
        %v581 = vmul.f32 %v557, %v573
        %v582 = vmul.f32 %v562, %v569
        %v583 = vmul.f32 %v558, %v573
        %s584 = scalar_lea.vmem %s3, 32
        %v585 = vld [vmem:[%s584] sm:$0xff]
        %v586 = vld [vmem:[%s584 + $0x8] sm:$0xff]
        %v587 = vld [vmem:[%s584 + $0x10] sm:$0xff]
        %v588 = vld [vmem:[%s584 + $0x18] sm:$0xff]
        %vm589 = vcmask 261120
        %v591 = vsel %vm589, %v585, 0
        %v594 = vsel %vm589, %v586, 0
        %v597 = vsel %vm589, %v587, 0
        %v600 = vsel %vm589, %v588, 0
        %602 = vmatprep.subr.mxu0 %v577
        %603 = vmatpush1.msra.mxu0 %v576
        %604 = vmatprep.subr.mxu0 %v579
        %605 = vmatpush1.msra.mxu0 %v578
        %606 = vmatprep.subr.mxu0 %v581
        %607 = vmatpush1.msra.mxu0 %v580
        %608 = vmatprep.subr.mxu0 %v583
        %609 = vmatpush1.msra.mxu0 %v582
        %610 = vmatprep.subr.mxu0 0.0
        %611 = vmatpush1.msra.mxu0 0.0
        %612 = vmatprep.subr.mxu0 0.0
        %613 = vmatpush1.msra.mxu0 0.0
        %614 = vmatprep.subr.mxu0 0.0
        %615 = vmatpush1.msra.mxu0 0.0
        %616 = vmatprep.subr.mxu0 0.0
        %617 = vmatpush1.msra.mxu0 0.0
        %618 = vmatprep.subr.mxu0 0.0
        %619 = vmatpush1.msra.mxu0 0.0
        %620 = vmatprep.subr.mxu0 0.0
        %621 = vmatpush1.msra.mxu0 0.0
        %622 = vmatprep.subr.mxu0 0.0
        %623 = vmatpush1.msra.mxu0 0.0
        %624 = vmatprep.subr.mxu0 0.0
        %625 = vmatpush1.msra.mxu0 0.0
        %626 = vmatprep.subr.mxu0 0.0
        %627 = vmatpush1.msra.mxu0 0.0
        %628 = vmatprep.subr.mxu0 0.0
        %629 = vmatpush1.msra.mxu0 0.0
        %630 = vmatprep.subr.mxu0 0.0
        %631 = vmatpush1.msra.mxu0 0.0
        %632 = vmatprep.subr.mxu0 0.0
        %633 = vmatpush1.msra.mxu0 0.0
        %634 = vmatprep.subr.mxu0 0.0
        %635 = vmatpush1.msra.mxu0 0.0
        %636 = vmatprep.subr.mxu0 0.0
        %637 = vmatpush1.msra.mxu0 0.0
        %638 = vmatprep.subr.mxu0 0.0
        %639 = vmatpush1.msra.mxu0 0.0
        %640 = vmatprep.subr.mxu0 0.0
        %641 = vmatpush1.msra.mxu0 0.0
        %642 = vmatprep.subr.mxu0 0.0
        %643 = vmatpush1.msra.mxu0 0.0
        %644 = vmatprep.subr.mxu0 0.0
        %645 = vmatpush1.msra.mxu0 0.0
        %646 = vmatprep.subr.mxu0 0.0
        %647 = vmatpush1.msra.mxu0 0.0
        %648 = vmatprep.subr.mxu0 0.0
        %649 = vmatpush1.msra.mxu0 0.0
        %650 = vmatprep.subr.mxu0 0.0
        %651 = vmatpush1.msra.mxu0 0.0
        %652 = vmatprep.subr.mxu0 0.0
        %653 = vmatpush1.msra.mxu0 0.0
        %654 = vmatprep.subr.mxu0 0.0
        %655 = vmatpush1.msra.mxu0 0.0
        %656 = vmatprep.subr.mxu0 0.0
        %657 = vmatpush1.msra.mxu0 0.0
        %658 = vmatprep.subr.mxu0 0.0
        %659 = vmatpush1.msra.mxu0 0.0
        %660 = vmatprep.subr.mxu0 0.0
        %661 = vmatpush1.msra.mxu0 0.0
        %662 = vmatprep.subr.mxu0 0.0
        %663 = vmatpush1.msra.mxu0 0.0
        %664 = vmatprep.subr.mxu0 0.0
        %665 = vmatpush1.msra.mxu0 0.0
        %666 = vmatprep.mubr.f32.mxu0 0.0
        %667 = vmatmul.mubr.f32.gmra.mrb[0].mxu0 %v591
        %v668 = vpop.f32.mrb[0].mxu0
        %v669 = vadd.f32 0.0, %v668
        %v670 = vpop.f32.mrb[0].mxu0
        %v671 = vadd.f32 0.0, %v670
        %672 = vmatprep.mubr.f32.mxu0 0.0
        %673 = vmatmul.mubr.f32.gmra.mrb[0].mxu0 %v594
        %v674 = vpop.f32.mrb[0].mxu0
        %v675 = vadd.f32 0.0, %v674
        %v676 = vpop.f32.mrb[0].mxu0
        %v677 = vadd.f32 0.0, %v676
        %678 = vmatprep.mubr.f32.mxu0 0.0
        %679 = vmatmul.mubr.f32.gmra.mrb[0].mxu0 %v597
        %v680 = vpop.f32.mrb[0].mxu0
        %v681 = vadd.f32 0.0, %v680
        %v682 = vpop.f32.mrb[0].mxu0
        %v683 = vadd.f32 0.0, %v682
        %684 = vmatprep.mubr.f32.mxu0 0.0
        %685 = vmatmul.mubr.f32.gmra.mrb[0].mxu0 %v600
        %v686 = vpop.f32.mrb[0].mxu0
        %v687 = vadd.f32 0.0, %v686
        %v688 = vpop.f32.mrb[0].mxu0
        %v689 = vadd.f32 0.0, %v688
        %690 = vdwg.mxu0
        %v692 = vsel %vm589, %v534, 0
        %v695 = vsel %vm589, %v535, 0
        %v698 = vsel %vm589, %v536, 0
        %v701 = vsel %vm589, %v537, 0
        %703 = vmatprep.subr.mxu0 %v527
        %704 = vmatpush1.msra.mxu0 %v526
        %705 = vmatprep.subr.mxu0 %v529
        %706 = vmatpush1.msra.mxu0 %v528
        %707 = vmatprep.subr.mxu0 %v531
        %708 = vmatpush1.msra.mxu0 %v530
        %709 = vmatprep.subr.mxu0 %v533
        %710 = vmatpush1.msra.mxu0 %v532
        %711 = vmatprep.subr.mxu0 0.0
        %712 = vmatpush1.msra.mxu0 0.0
        %713 = vmatprep.subr.mxu0 0.0
        %714 = vmatpush1.msra.mxu0 0.0
        %715 = vmatprep.subr.mxu0 0.0
        %716 = vmatpush1.msra.mxu0 0.0
        %717 = vmatprep.subr.mxu0 0.0
        %718 = vmatpush1.msra.mxu0 0.0
        %719 = vmatprep.subr.mxu0 0.0
        %720 = vmatpush1.msra.mxu0 0.0
        %721 = vmatprep.subr.mxu0 0.0
        %722 = vmatpush1.msra.mxu0 0.0
        %723 = vmatprep.subr.mxu0 0.0
        %724 = vmatpush1.msra.mxu0 0.0
        %725 = vmatprep.subr.mxu0 0.0
        %726 = vmatpush1.msra.mxu0 0.0
        %727 = vmatprep.subr.mxu0 0.0
        %728 = vmatpush1.msra.mxu0 0.0
        %729 = vmatprep.subr.mxu0 0.0
        %730 = vmatpush1.msra.mxu0 0.0
        %731 = vmatprep.subr.mxu0 0.0
        %732 = vmatpush1.msra.mxu0 0.0
        %733 = vmatprep.subr.mxu0 0.0
        %734 = vmatpush1.msra.mxu0 0.0
        %735 = vmatprep.subr.mxu0 0.0
        %736 = vmatpush1.msra.mxu0 0.0
        %737 = vmatprep.subr.mxu0 0.0
        %738 = vmatpush1.msra.mxu0 0.0
        %739 = vmatprep.subr.mxu0 0.0
        %740 = vmatpush1.msra.mxu0 0.0
        %741 = vmatprep.subr.mxu0 0.0
        %742 = vmatpush1.msra.mxu0 0.0
        %743 = vmatprep.subr.mxu0 0.0
        %744 = vmatpush1.msra.mxu0 0.0
        %745 = vmatprep.subr.mxu0 0.0
        %746 = vmatpush1.msra.mxu0 0.0
        %747 = vmatprep.subr.mxu0 0.0
        %748 = vmatpush1.msra.mxu0 0.0
        %749 = vmatprep.subr.mxu0 0.0
        %750 = vmatpush1.msra.mxu0 0.0
        %751 = vmatprep.subr.mxu0 0.0
        %752 = vmatpush1.msra.mxu0 0.0
        %753 = vmatprep.subr.mxu0 0.0
        %754 = vmatpush1.msra.mxu0 0.0
        %755 = vmatprep.subr.mxu0 0.0
        %756 = vmatpush1.msra.mxu0 0.0
        %757 = vmatprep.subr.mxu0 0.0
        %758 = vmatpush1.msra.mxu0 0.0
        %759 = vmatprep.subr.mxu0 0.0
        %760 = vmatpush1.msra.mxu0 0.0
        %761 = vmatprep.subr.mxu0 0.0
        %762 = vmatpush1.msra.mxu0 0.0
        %763 = vmatprep.subr.mxu0 0.0
        %764 = vmatpush1.msra.mxu0 0.0
        %765 = vmatprep.subr.mxu0 0.0
        %766 = vmatpush1.msra.mxu0 0.0
        %767 = vmatprep.mubr.f32.mxu0 0.0
        %768 = vmatmul.mubr.f32.gmra.mrb[0].mxu0 %v692
        %v769 = vpop.f32.mrb[0].mxu0
        %v770 = vadd.f32 %v669, %v769
        %v771 = vpop.f32.mrb[0].mxu0
        %v772 = vadd.f32 %v671, %v771
        %773 = vmatprep.mubr.f32.mxu0 0.0
        %774 = vmatmul.mubr.f32.gmra.mrb[0].mxu0 %v695
        %v775 = vpop.f32.mrb[0].mxu0
        %v776 = vadd.f32 %v675, %v775
        %v777 = vpop.f32.mrb[0].mxu0
        %v778 = vadd.f32 %v677, %v777
        %779 = vmatprep.mubr.f32.mxu0 0.0
        %780 = vmatmul.mubr.f32.gmra.mrb[0].mxu0 %v698
        %v781 = vpop.f32.mrb[0].mxu0
        %v782 = vadd.f32 %v681, %v781
        %v783 = vpop.f32.mrb[0].mxu0
        %v784 = vadd.f32 %v683, %v783
        %785 = vmatprep.mubr.f32.mxu0 0.0
        %786 = vmatmul.mubr.f32.gmra.mrb[0].mxu0 %v701
        %v787 = vpop.f32.mrb[0].mxu0
        %v788 = vadd.f32 %v687, %v787
        %v789 = vpop.f32.mrb[0].mxu0
        %v790 = vadd.f32 %v689, %v789
        %791 = vdwg.mxu0
        %792 = vrot.lane.b32.xlu0 %v479, 15
        %v793 = vpop.permute.xlu0 %792
        %794 = vrot.lane.b32.xlu0 %v481, 15
        %v795 = vpop.permute.xlu0 %794
        %796 = vrot.lane.b32.xlu0 %v483, 15
        %v797 = vpop.permute.xlu0 %796
        %798 = vrot.lane.b32.xlu0 %v485, 15
        %v799 = vpop.permute.xlu0 %798
        %800 = vrot.lane.b32.xlu0 %v480, 15
        %v801 = vpop.permute.xlu0 %800
        %802 = vrot.lane.b32.xlu0 %v482, 15
        %v803 = vpop.permute.xlu0 %802
        %804 = vrot.lane.b32.xlu0 %v484, 15
        %v805 = vpop.permute.xlu0 %804
        %806 = vrot.lane.b32.xlu0 %v486, 15
        %v807 = vpop.permute.xlu0 %806
        %vm808 = vcmp.lt.s32.totalorder %v504, 15
        %v809 = vsel %vm808, %v793, %v801
        %v810 = vsel %vm808, %v795, %v803
        %v811 = vsel %vm808, %v797, %v805
        %v812 = vsel %vm808, %v799, %v807
        %v813 = vsel %vm808, %v801, %v793
        %v814 = vsel %vm808, %v803, %v795
        %v815 = vsel %vm808, %v805, %v797
        %v816 = vsel %vm808, %v807, %v799
        %s817 = scalar_lea.vmem [#allocation5], 4
        %v818 = vld [vmem:[%s817] sm:$0x3]
        %v820 = vlaneseq
        %v821 = vshrl.u32 %v820, 7
        %v822 = vsub.s32 0, %v821
        %v823 = vrot.slane %v818, %v822
        %v824 = vlaneseq
        %v825 = vshrl.u32 %v824, 7
        %v826 = vsub.s32 1, %v825
        %v827 = vrot.slane %v818, %v826
        %v830 = vmul.f32 %v813, %v823
        %v831 = vmul.f32 %v809, %v827
        %v832 = vmul.f32 %v814, %v823
        %v833 = vmul.f32 %v810, %v827
        %v834 = vmul.f32 %v815, %v823
        %v835 = vmul.f32 %v811, %v827
        %v836 = vmul.f32 %v816, %v823
        %v837 = vmul.f32 %v812, %v827
        %s838 = scalar_lea.vmem %s3, 64
        %v839 = vld [vmem:[%s838] sm:$0xff]
        %v840 = vld [vmem:[%s838 + $0x8] sm:$0xff]
        %v841 = vld [vmem:[%s838 + $0x10] sm:$0xff]
        %v842 = vld [vmem:[%s838 + $0x18] sm:$0xff]
        %v844 = vsel %vm589, %v839, 0
        %v847 = vsel %vm589, %v840, 0
        %v850 = vsel %vm589, %v841, 0
        %v853 = vsel %vm589, %v842, 0
        %855 = vmatprep.subr.mxu0 %v831
        %856 = vmatpush1.msra.mxu0 %v830
        %857 = vmatprep.subr.mxu0 %v833
        %858 = vmatpush1.msra.mxu0 %v832
        %859 = vmatprep.subr.mxu0 %v835
        %860 = vmatpush1.msra.mxu0 %v834
        %861 = vmatprep.subr.mxu0 %v837
        %862 = vmatpush1.msra.mxu0 %v836
        %863 = vmatprep.subr.mxu0 0.0
        %864 = vmatpush1.msra.mxu0 0.0
        %865 = vmatprep.subr.mxu0 0.0
        %866 = vmatpush1.msra.mxu0 0.0
        %867 = vmatprep.subr.mxu0 0.0
        %868 = vmatpush1.msra.mxu0 0.0
        %869 = vmatprep.subr.mxu0 0.0
        %870 = vmatpush1.msra.mxu0 0.0
        %871 = vmatprep.subr.mxu0 0.0
        %872 = vmatpush1.msra.mxu0 0.0
        %873 = vmatprep.subr.mxu0 0.0
        %874 = vmatpush1.msra.mxu0 0.0
        %875 = vmatprep.subr.mxu0 0.0
        %876 = vmatpush1.msra.mxu0 0.0
        %877 = vmatprep.subr.mxu0 0.0
        %878 = vmatpush1.msra.mxu0 0.0
        %879 = vmatprep.subr.mxu0 0.0
        %880 = vmatpush1.msra.mxu0 0.0
        %881 = vmatprep.subr.mxu0 0.0
        %882 = vmatpush1.msra.mxu0 0.0
        %883 = vmatprep.subr.mxu0 0.0
        %884 = vmatpush1.msra.mxu0 0.0
        %885 = vmatprep.subr.mxu0 0.0
        %886 = vmatpush1.msra.mxu0 0.0
        %887 = vmatprep.subr.mxu0 0.0
        %888 = vmatpush1.msra.mxu0 0.0
        %889 = vmatprep.subr.mxu0 0.0
        %890 = vmatpush1.msra.mxu0 0.0
        %891 = vmatprep.subr.mxu0 0.0
        %892 = vmatpush1.msra.mxu0 0.0
        %893 = vmatprep.subr.mxu0 0.0
        %894 = vmatpush1.msra.mxu0 0.0
        %895 = vmatprep.subr.mxu0 0.0
        %896 = vmatpush1.msra.mxu0 0.0
        %897 = vmatprep.subr.mxu0 0.0
        %898 = vmatpush1.msra.mxu0 0.0
        %899 = vmatprep.subr.mxu0 0.0
        %900 = vmatpush1.msra.mxu0 0.0
        %901 = vmatprep.subr.mxu0 0.0
        %902 = vmatpush1.msra.mxu0 0.0
        %903 = vmatprep.subr.mxu0 0.0
        %904 = vmatpush1.msra.mxu0 0.0
        %905 = vmatprep.subr.mxu0 0.0
        %906 = vmatpush1.msra.mxu0 0.0
        %907 = vmatprep.subr.mxu0 0.0
        %908 = vmatpush1.msra.mxu0 0.0
        %909 = vmatprep.subr.mxu0 0.0
        %910 = vmatpush1.msra.mxu0 0.0
        %911 = vmatprep.subr.mxu0 0.0
        %912 = vmatpush1.msra.mxu0 0.0
        %913 = vmatprep.subr.mxu0 0.0
        %914 = vmatpush1.msra.mxu0 0.0
        %915 = vmatprep.subr.mxu0 0.0
        %916 = vmatpush1.msra.mxu0 0.0
        %917 = vmatprep.subr.mxu0 0.0
        %918 = vmatpush1.msra.mxu0 0.0
        %919 = vmatprep.mubr.f32.mxu0 0.0
        %920 = vmatmul.mubr.f32.gmra.mrb[0].mxu0 %v844
        %v921 = vpop.f32.mrb[0].mxu0
        %v922 = vadd.f32 0.0, %v921
        %v923 = vpop.f32.mrb[0].mxu0
        %v924 = vadd.f32 0.0, %v923
        %925 = vmatprep.mubr.f32.mxu0 0.0
        %926 = vmatmul.mubr.f32.gmra.mrb[0].mxu0 %v847
        %v927 = vpop.f32.mrb[0].mxu0
        %v928 = vadd.f32 0.0, %v927
        %v929 = vpop.f32.mrb[0].mxu0
        %v930 = vadd.f32 0.0, %v929
        %931 = vmatprep.mubr.f32.mxu0 0.0
        %932 = vmatmul.mubr.f32.gmra.mrb[0].mxu0 %v850
        %v933 = vpop.f32.mrb[0].mxu0
        %v934 = vadd.f32 0.0, %v933
        %v935 = vpop.f32.mrb[0].mxu0
        %v936 = vadd.f32 0.0, %v935
        %937 = vmatprep.mubr.f32.mxu0 0.0
        %938 = vmatmul.mubr.f32.gmra.mrb[0].mxu0 %v853
        %v939 = vpop.f32.mrb[0].mxu0
        %v940 = vadd.f32 0.0, %v939
        %v941 = vpop.f32.mrb[0].mxu0
        %v942 = vadd.f32 0.0, %v941
        %943 = vdwg.mxu0
        %v944 = vadd.f32 %v770, %v922
        %v945 = vadd.f32 %v772, %v924
        %v946 = vadd.f32 %v776, %v928
        %v947 = vadd.f32 %v778, %v930
        %v948 = vadd.f32 %v782, %v934
        %v949 = vadd.f32 %v784, %v936
        %v950 = vadd.f32 %v788, %v940
        %v951 = vadd.f32 %v790, %v942
        %952 = vrot.lane.b32.xlu0 %v479, 1
        %v953 = vpop.permute.xlu0 %952
        %954 = vrot.lane.b32.xlu0 %v481, 1
        %v955 = vpop.permute.xlu0 %954
        %956 = vrot.lane.b32.xlu0 %v483, 1
        %v957 = vpop.permute.xlu0 %956
        %958 = vrot.lane.b32.xlu0 %v485, 1
        %v959 = vpop.permute.xlu0 %958
        %960 = vrot.lane.b32.xlu0 %v480, 1
        %v961 = vpop.permute.xlu0 %960
        %962 = vrot.lane.b32.xlu0 %v482, 1
        %v963 = vpop.permute.xlu0 %962
        %964 = vrot.lane.b32.xlu0 %v484, 1
        %v965 = vpop.permute.xlu0 %964
        %966 = vrot.lane.b32.xlu0 %v486, 1
        %v967 = vpop.permute.xlu0 %966
        %vm968 = vcmp.lt.s32.totalorder %v504, 1
        %v969 = vsel %vm968, %v953, %v961
        %v970 = vsel %vm968, %v955, %v963
        %v971 = vsel %vm968, %v957, %v965
        %v972 = vsel %vm968, %v959, %v967
        %v973 = vsel %vm968, %v961, %v953
        %v974 = vsel %vm968, %v963, %v955
        %v975 = vsel %vm968, %v965, %v957
        %v976 = vsel %vm968, %v967, %v959
        %s977 = scalar_lea.vmem [#allocation5], 6
        %v978 = vld [vmem:[%s977] sm:$0x3]
        %v980 = vlaneseq
        %v981 = vshrl.u32 %v980, 7
        %v982 = vsub.s32 0, %v981
        %v983 = vrot.slane %v978, %v982
        %v984 = vlaneseq
        %v985 = vshrl.u32 %v984, 7
        %v986 = vsub.s32 1, %v985
        %v987 = vrot.slane %v978, %v986
        %v990 = vmul.f32 %v973, %v983
        %v991 = vmul.f32 %v969, %v987
        %v992 = vmul.f32 %v974, %v983
        %v993 = vmul.f32 %v970, %v987
        %v994 = vmul.f32 %v975, %v983
        %v995 = vmul.f32 %v971, %v987
        %v996 = vmul.f32 %v976, %v983
        %v997 = vmul.f32 %v972, %v987
        %s998 = scalar_lea.vmem %s3, 96
        %v999 = vld [vmem:[%s998] sm:$0xff]
        %v1000 = vld [vmem:[%s998 + $0x8] sm:$0xff]
        %v1001 = vld [vmem:[%s998 + $0x10] sm:$0xff]
        %v1002 = vld [vmem:[%s998 + $0x18] sm:$0xff]
        %v1004 = vsel %vm589, %v999, 0
        %v1007 = vsel %vm589, %v1000, 0
        %v1010 = vsel %vm589, %v1001, 0
        %v1013 = vsel %vm589, %v1002, 0
        %1015 = vmatprep.subr.mxu0 %v991
        %1016 = vmatpush1.msra.mxu0 %v990
        %1017 = vmatprep.subr.mxu0 %v993
        %1018 = vmatpush1.msra.mxu0 %v992
        %1019 = vmatprep.subr.mxu0 %v995
        %1020 = vmatpush1.msra.mxu0 %v994
        %1021 = vmatprep.subr.mxu0 %v997
        %1022 = vmatpush1.msra.mxu0 %v996
        %1023 = vmatprep.subr.mxu0 0.0
        %1024 = vmatpush1.msra.mxu0 0.0
        %1025 = vmatprep.subr.mxu0 0.0
        %1026 = vmatpush1.msra.mxu0 0.0
        %1027 = vmatprep.subr.mxu0 0.0
        %1028 = vmatpush1.msra.mxu0 0.0
        %1029 = vmatprep.subr.mxu0 0.0
        %1030 = vmatpush1.msra.mxu0 0.0
        %1031 = vmatprep.subr.mxu0 0.0
        %1032 = vmatpush1.msra.mxu0 0.0
        %1033 = vmatprep.subr.mxu0 0.0
        %1034 = vmatpush1.msra.mxu0 0.0
        %1035 = vmatprep.subr.mxu0 0.0
        %1036 = vmatpush1.msra.mxu0 0.0
        %1037 = vmatprep.subr.mxu0 0.0
        %1038 = vmatpush1.msra.mxu0 0.0
        %1039 = vmatprep.subr.mxu0 0.0
        %1040 = vmatpush1.msra.mxu0 0.0
        %1041 = vmatprep.subr.mxu0 0.0
        %1042 = vmatpush1.msra.mxu0 0.0
        %1043 = vmatprep.subr.mxu0 0.0
        %1044 = vmatpush1.msra.mxu0 0.0
        %1045 = vmatprep.subr.mxu0 0.0
        %1046 = vmatpush1.msra.mxu0 0.0
        %1047 = vmatprep.subr.mxu0 0.0
        %1048 = vmatpush1.msra.mxu0 0.0
        %1049 = vmatprep.subr.mxu0 0.0
        %1050 = vmatpush1.msra.mxu0 0.0
        %1051 = vmatprep.subr.mxu0 0.0
        %1052 = vmatpush1.msra.mxu0 0.0
        %1053 = vmatprep.subr.mxu0 0.0
        %1054 = vmatpush1.msra.mxu0 0.0
        %1055 = vmatprep.subr.mxu0 0.0
        %1056 = vmatpush1.msra.mxu0 0.0
        %1057 = vmatprep.subr.mxu0 0.0
        %1058 = vmatpush1.msra.mxu0 0.0
        %1059 = vmatprep.subr.mxu0 0.0
        %1060 = vmatpush1.msra.mxu0 0.0
        %1061 = vmatprep.subr.mxu0 0.0
        %1062 = vmatpush1.msra.mxu0 0.0
        %1063 = vmatprep.subr.mxu0 0.0
        %1064 = vmatpush1.msra.mxu0 0.0
        %1065 = vmatprep.subr.mxu0 0.0
        %1066 = vmatpush1.msra.mxu0 0.0
        %1067 = vmatprep.subr.mxu0 0.0
        %1068 = vmatpush1.msra.mxu0 0.0
        %1069 = vmatprep.subr.mxu0 0.0
        %1070 = vmatpush1.msra.mxu0 0.0
        %1071 = vmatprep.subr.mxu0 0.0
        %1072 = vmatpush1.msra.mxu0 0.0
        %1073 = vmatprep.subr.mxu0 0.0
        %1074 = vmatpush1.msra.mxu0 0.0
        %1075 = vmatprep.subr.mxu0 0.0
        %1076 = vmatpush1.msra.mxu0 0.0
        %1077 = vmatprep.subr.mxu0 0.0
        %1078 = vmatpush1.msra.mxu0 0.0
        %1079 = vmatprep.mubr.f32.mxu0 0.0
        %1080 = vmatmul.mubr.f32.gmra.mrb[0].mxu0 %v1004
        %v1081 = vpop.f32.mrb[0].mxu0
        %v1082 = vadd.f32 0.0, %v1081
        %v1083 = vpop.f32.mrb[0].mxu0
        %v1084 = vadd.f32 0.0, %v1083
        %1085 = vmatprep.mubr.f32.mxu0 0.0
        %1086 = vmatmul.mubr.f32.gmra.mrb[0].mxu0 %v1007
        %v1087 = vpop.f32.mrb[0].mxu0
        %v1088 = vadd.f32 0.0, %v1087
        %v1089 = vpop.f32.mrb[0].mxu0
        %v1090 = vadd.f32 0.0, %v1089
        %1091 = vmatprep.mubr.f32.mxu0 0.0
        %1092 = vmatmul.mubr.f32.gmra.mrb[0].mxu0 %v1010
        %v1093 = vpop.f32.mrb[0].mxu0
        %v1094 = vadd.f32 0.0, %v1093
        %v1095 = vpop.f32.mrb[0].mxu0
        %v1096 = vadd.f32 0.0, %v1095
        %1097 = vmatprep.mubr.f32.mxu0 0.0
        %1098 = vmatmul.mubr.f32.gmra.mrb[0].mxu0 %v1013
        %v1099 = vpop.f32.mrb[0].mxu0
        %v1100 = vadd.f32 0.0, %v1099
        %v1101 = vpop.f32.mrb[0].mxu0
        %v1102 = vadd.f32 0.0, %v1101
        %1103 = vdwg.mxu0
        %v1104 = vadd.f32 %v944, %v1082
        %v1105 = vadd.f32 %v945, %v1084
        %v1106 = vadd.f32 %v946, %v1088
        %v1107 = vadd.f32 %v947, %v1090
        %v1108 = vadd.f32 %v948, %v1094
        %v1109 = vadd.f32 %v949, %v1096
        %v1110 = vadd.f32 %v950, %v1100
        %v1111 = vadd.f32 %v951, %v1102
        %s1112 = scalar_lea.vmem %s3, 128
        %v1113 = vld [vmem:[%s1112] sm:$0xff]
        %v1114 = vld [vmem:[%s1112 + $0x8] sm:$0xff]
        %v1115 = vld [vmem:[%s1112 + $0x10] sm:$0xff]
        %v1116 = vld [vmem:[%s1112 + $0x18] sm:$0xff]
        %v1118 = vsel %vm589, %v1113, 0
        %v1121 = vsel %vm589, %v1114, 0
        %v1124 = vsel %vm589, %v1115, 0
        %v1127 = vsel %vm589, %v1116, 0
        %1129 = vmatprep.subr.mxu0 %v480
        %1130 = vmatpush1.msra.mxu0 %v479
        %1131 = vmatprep.subr.mxu0 %v482
        %1132 = vmatpush1.msra.mxu0 %v481
        %1133 = vmatprep.subr.mxu0 %v484
        %1134 = vmatpush1.msra.mxu0 %v483
        %1135 = vmatprep.subr.mxu0 %v486
        %1136 = vmatpush1.msra.mxu0 %v485
        %1137 = vmatprep.subr.mxu0 0.0
        %1138 = vmatpush1.msra.mxu0 0.0
        %1139 = vmatprep.subr.mxu0 0.0
        %1140 = vmatpush1.msra.mxu0 0.0
        %1141 = vmatprep.subr.mxu0 0.0
        %1142 = vmatpush1.msra.mxu0 0.0
        %1143 = vmatprep.subr.mxu0 0.0
        %1144 = vmatpush1.msra.mxu0 0.0
        %1145 = vmatprep.subr.mxu0 0.0
        %1146 = vmatpush1.msra.mxu0 0.0
        %1147 = vmatprep.subr.mxu0 0.0
        %1148 = vmatpush1.msra.mxu0 0.0
        %1149 = vmatprep.subr.mxu0 0.0
        %1150 = vmatpush1.msra.mxu0 0.0
        %1151 = vmatprep.subr.mxu0 0.0
        %1152 = vmatpush1.msra.mxu0 0.0
        %1153 = vmatprep.subr.mxu0 0.0
        %1154 = vmatpush1.msra.mxu0 0.0
        %1155 = vmatprep.subr.mxu0 0.0
        %1156 = vmatpush1.msra.mxu0 0.0
        %1157 = vmatprep.subr.mxu0 0.0
        %1158 = vmatpush1.msra.mxu0 0.0
        %1159 = vmatprep.subr.mxu0 0.0
        %1160 = vmatpush1.msra.mxu0 0.0
        %1161 = vmatprep.subr.mxu0 0.0
        %1162 = vmatpush1.msra.mxu0 0.0
        %1163 = vmatprep.subr.mxu0 0.0
        %1164 = vmatpush1.msra.mxu0 0.0
        %1165 = vmatprep.subr.mxu0 0.0
        %1166 = vmatpush1.msra.mxu0 0.0
        %1167 = vmatprep.subr.mxu0 0.0
        %1168 = vmatpush1.msra.mxu0 0.0
        %1169 = vmatprep.subr.mxu0 0.0
        %1170 = vmatpush1.msra.mxu0 0.0
        %1171 = vmatprep.subr.mxu0 0.0
        %1172 = vmatpush1.msra.mxu0 0.0
        %1173 = vmatprep.subr.mxu0 0.0
        %1174 = vmatpush1.msra.mxu0 0.0
        %1175 = vmatprep.subr.mxu0 0.0
        %1176 = vmatpush1.msra.mxu0 0.0
        %1177 = vmatprep.subr.mxu0 0.0
        %1178 = vmatpush1.msra.mxu0 0.0
        %1179 = vmatprep.subr.mxu0 0.0
        %1180 = vmatpush1.msra.mxu0 0.0
        %1181 = vmatprep.subr.mxu0 0.0
        %1182 = vmatpush1.msra.mxu0 0.0
        %1183 = vmatprep.subr.mxu0 0.0
        %1184 = vmatpush1.msra.mxu0 0.0
        %1185 = vmatprep.subr.mxu0 0.0
        %1186 = vmatpush1.msra.mxu0 0.0
        %1187 = vmatprep.subr.mxu0 0.0
        %1188 = vmatpush1.msra.mxu0 0.0
        %1189 = vmatprep.subr.mxu0 0.0
        %1190 = vmatpush1.msra.mxu0 0.0
        %1191 = vmatprep.subr.mxu0 0.0
        %1192 = vmatpush1.msra.mxu0 0.0
        %1193 = vmatprep.mubr.f32.mxu0 0.0
        %1194 = vmatmul.mubr.f32.gmra.mrb[0].mxu0 %v1118
        %v1195 = vpop.f32.mrb[0].mxu0
        %v1196 = vadd.f32 0.0, %v1195
        %v1197 = vpop.f32.mrb[0].mxu0
        %v1198 = vadd.f32 0.0, %v1197
        %1199 = vmatprep.mubr.f32.mxu0 0.0
        %1200 = vmatmul.mubr.f32.gmra.mrb[0].mxu0 %v1121
        %v1201 = vpop.f32.mrb[0].mxu0
        %v1202 = vadd.f32 0.0, %v1201
        %v1203 = vpop.f32.mrb[0].mxu0
        %v1204 = vadd.f32 0.0, %v1203
        %1205 = vmatprep.mubr.f32.mxu0 0.0
        %1206 = vmatmul.mubr.f32.gmra.mrb[0].mxu0 %v1124
        %v1207 = vpop.f32.mrb[0].mxu0
        %v1208 = vadd.f32 0.0, %v1207
        %v1209 = vpop.f32.mrb[0].mxu0
        %v1210 = vadd.f32 0.0, %v1209
        %1211 = vmatprep.mubr.f32.mxu0 0.0
        %1212 = vmatmul.mubr.f32.gmra.mrb[0].mxu0 %v1127
        %v1213 = vpop.f32.mrb[0].mxu0
        %v1214 = vadd.f32 0.0, %v1213
        %v1215 = vpop.f32.mrb[0].mxu0
        %v1216 = vadd.f32 0.0, %v1215
        %1217 = vdwg.mxu0
        %v1218 = vadd.f32 %v1104, %v1196
        %v1219 = vadd.f32 %v1105, %v1198
        %v1220 = vadd.f32 %v1106, %v1202
        %v1221 = vadd.f32 %v1107, %v1204
        %v1222 = vadd.f32 %v1108, %v1208
        %v1223 = vadd.f32 %v1109, %v1210
        %v1224 = vadd.f32 %v1110, %v1214
        %v1225 = vadd.f32 %v1111, %v1216
        %1226 = vrot.lane.b32.xlu0 %v479, 127
        %v1227 = vpop.permute.xlu0 %1226
        %1228 = vrot.lane.b32.xlu0 %v481, 127
        %v1229 = vpop.permute.xlu0 %1228
        %1230 = vrot.lane.b32.xlu0 %v483, 127
        %v1231 = vpop.permute.xlu0 %1230
        %1232 = vrot.lane.b32.xlu0 %v485, 127
        %v1233 = vpop.permute.xlu0 %1232
        %1234 = vrot.lane.b32.xlu0 %v480, 127
        %v1235 = vpop.permute.xlu0 %1234
        %1236 = vrot.lane.b32.xlu0 %v482, 127
        %v1237 = vpop.permute.xlu0 %1236
        %1238 = vrot.lane.b32.xlu0 %v484, 127
        %v1239 = vpop.permute.xlu0 %1238
        %1240 = vrot.lane.b32.xlu0 %v486, 127
        %v1241 = vpop.permute.xlu0 %1240
        %vm1242 = vcmp.lt.s32.totalorder %v504, 127
        %v1243 = vsel %vm1242, %v1227, %v1235
        %v1244 = vsel %vm1242, %v1229, %v1237
        %v1245 = vsel %vm1242, %v1231, %v1239
        %v1246 = vsel %vm1242, %v1233, %v1241
        %v1247 = vsel %vm1242, %v1235, %v1227
        %v1248 = vsel %vm1242, %v1237, %v1229
        %v1249 = vsel %vm1242, %v1239, %v1231
        %v1250 = vsel %vm1242, %v1241, %v1233
        %s1251 = scalar_lea.vmem [#allocation5], 10
        %v1252 = vld [vmem:[%s1251] sm:$0x3]
        %v1254 = vlaneseq
        %v1255 = vshrl.u32 %v1254, 7
        %v1256 = vsub.s32 0, %v1255
        %v1257 = vrot.slane %v1252, %v1256
        %v1258 = vlaneseq
        %v1259 = vshrl.u32 %v1258, 7
        %v1260 = vsub.s32 1, %v1259
        %v1261 = vrot.slane %v1252, %v1260
        %v1264 = vmul.f32 %v1243, %v1257
        %v1265 = vmul.f32 %v1247, %v1261
        %v1266 = vmul.f32 %v1244, %v1257
        %v1267 = vmul.f32 %v1248, %v1261
        %v1268 = vmul.f32 %v1245, %v1257
        %v1269 = vmul.f32 %v1249, %v1261
        %v1270 = vmul.f32 %v1246, %v1257
        %v1271 = vmul.f32 %v1250, %v1261
        %s1272 = scalar_lea.vmem %s3, 160
        %v1273 = vld [vmem:[%s1272] sm:$0xff]
        %v1274 = vld [vmem:[%s1272 + $0x8] sm:$0xff]
        %v1275 = vld [vmem:[%s1272 + $0x10] sm:$0xff]
        %v1276 = vld [vmem:[%s1272 + $0x18] sm:$0xff]
        %v1278 = vsel %vm589, %v1273, 0
        %v1281 = vsel %vm589, %v1274, 0
        %v1284 = vsel %vm589, %v1275, 0
        %v1287 = vsel %vm589, %v1276, 0
        %1289 = vmatprep.subr.mxu0 %v1265
        %1290 = vmatpush1.msra.mxu0 %v1264
        %1291 = vmatprep.subr.mxu0 %v1267
        %1292 = vmatpush1.msra.mxu0 %v1266
        %1293 = vmatprep.subr.mxu0 %v1269
        %1294 = vmatpush1.msra.mxu0 %v1268
        %1295 = vmatprep.subr.mxu0 %v1271
        %1296 = vmatpush1.msra.mxu0 %v1270
        %1297 = vmatprep.subr.mxu0 0.0
        %1298 = vmatpush1.msra.mxu0 0.0
        %1299 = vmatprep.subr.mxu0 0.0
        %1300 = vmatpush1.msra.mxu0 0.0
        %1301 = vmatprep.subr.mxu0 0.0
        %1302 = vmatpush1.msra.mxu0 0.0
        %1303 = vmatprep.subr.mxu0 0.0
        %1304 = vmatpush1.msra.mxu0 0.0
        %1305 = vmatprep.subr.mxu0 0.0
        %1306 = vmatpush1.msra.mxu0 0.0
        %1307 = vmatprep.subr.mxu0 0.0
        %1308 = vmatpush1.msra.mxu0 0.0
        %1309 = vmatprep.subr.mxu0 0.0
        %1310 = vmatpush1.msra.mxu0 0.0
        %1311 = vmatprep.subr.mxu0 0.0
        %1312 = vmatpush1.msra.mxu0 0.0
        %1313 = vmatprep.subr.mxu0 0.0
        %1314 = vmatpush1.msra.mxu0 0.0
        %1315 = vmatprep.subr.mxu0 0.0
        %1316 = vmatpush1.msra.mxu0 0.0
        %1317 = vmatprep.subr.mxu0 0.0
        %1318 = vmatpush1.msra.mxu0 0.0
        %1319 = vmatprep.subr.mxu0 0.0
        %1320 = vmatpush1.msra.mxu0 0.0
        %1321 = vmatprep.subr.mxu0 0.0
        %1322 = vmatpush1.msra.mxu0 0.0
        %1323 = vmatprep.subr.mxu0 0.0
        %1324 = vmatpush1.msra.mxu0 0.0
        %1325 = vmatprep.subr.mxu0 0.0
        %1326 = vmatpush1.msra.mxu0 0.0
        %1327 = vmatprep.subr.mxu0 0.0
        %1328 = vmatpush1.msra.mxu0 0.0
        %1329 = vmatprep.subr.mxu0 0.0
        %1330 = vmatpush1.msra.mxu0 0.0
        %1331 = vmatprep.subr.mxu0 0.0
        %1332 = vmatpush1.msra.mxu0 0.0
        %1333 = vmatprep.subr.mxu0 0.0
        %1334 = vmatpush1.msra.mxu0 0.0
        %1335 = vmatprep.subr.mxu0 0.0
        %1336 = vmatpush1.msra.mxu0 0.0
        %1337 = vmatprep.subr.mxu0 0.0
        %1338 = vmatpush1.msra.mxu0 0.0
        %1339 = vmatprep.subr.mxu0 0.0
        %1340 = vmatpush1.msra.mxu0 0.0
        %1341 = vmatprep.subr.mxu0 0.0
        %1342 = vmatpush1.msra.mxu0 0.0
        %1343 = vmatprep.subr.mxu0 0.0
        %1344 = vmatpush1.msra.mxu0 0.0
        %1345 = vmatprep.subr.mxu0 0.0
        %1346 = vmatpush1.msra.mxu0 0.0
        %1347 = vmatprep.subr.mxu0 0.0
        %1348 = vmatpush1.msra.mxu0 0.0
        %1349 = vmatprep.subr.mxu0 0.0
        %1350 = vmatpush1.msra.mxu0 0.0
        %1351 = vmatprep.subr.mxu0 0.0
        %1352 = vmatpush1.msra.mxu0 0.0
        %1353 = vmatprep.mubr.f32.mxu0 0.0
        %1354 = vmatmul.mubr.f32.gmra.mrb[0].mxu0 %v1278
        %v1355 = vpop.f32.mrb[0].mxu0
        %v1356 = vadd.f32 0.0, %v1355
        %v1357 = vpop.f32.mrb[0].mxu0
        %v1358 = vadd.f32 0.0, %v1357
        %1359 = vmatprep.mubr.f32.mxu0 0.0
        %1360 = vmatmul.mubr.f32.gmra.mrb[0].mxu0 %v1281
        %v1361 = vpop.f32.mrb[0].mxu0
        %v1362 = vadd.f32 0.0, %v1361
        %v1363 = vpop.f32.mrb[0].mxu0
        %v1364 = vadd.f32 0.0, %v1363
        %1365 = vmatprep.mubr.f32.mxu0 0.0
        %1366 = vmatmul.mubr.f32.gmra.mrb[0].mxu0 %v1284
        %v1367 = vpop.f32.mrb[0].mxu0
        %v1368 = vadd.f32 0.0, %v1367
        %v1369 = vpop.f32.mrb[0].mxu0
        %v1370 = vadd.f32 0.0, %v1369
        %1371 = vmatprep.mubr.f32.mxu0 0.0
        %1372 = vmatmul.mubr.f32.gmra.mrb[0].mxu0 %v1287
        %v1373 = vpop.f32.mrb[0].mxu0
        %v1374 = vadd.f32 0.0, %v1373
        %v1375 = vpop.f32.mrb[0].mxu0
        %v1376 = vadd.f32 0.0, %v1375
        %1377 = vdwg.mxu0
        %v1378 = vadd.f32 %v1218, %v1356
        %v1379 = vadd.f32 %v1219, %v1358
        %v1380 = vadd.f32 %v1220, %v1362
        %v1381 = vadd.f32 %v1221, %v1364
        %v1382 = vadd.f32 %v1222, %v1368
        %v1383 = vadd.f32 %v1223, %v1370
        %v1384 = vadd.f32 %v1224, %v1374
        %v1385 = vadd.f32 %v1225, %v1376
        %1386 = vrot.lane.b32.xlu0 %v479, 113
        %v1387 = vpop.permute.xlu0 %1386
        %1388 = vrot.lane.b32.xlu0 %v481, 113
        %v1389 = vpop.permute.xlu0 %1388
        %1390 = vrot.lane.b32.xlu0 %v483, 113
        %v1391 = vpop.permute.xlu0 %1390
        %1392 = vrot.lane.b32.xlu0 %v485, 113
        %v1393 = vpop.permute.xlu0 %1392
        %1394 = vrot.lane.b32.xlu0 %v480, 113
        %v1395 = vpop.permute.xlu0 %1394
        %1396 = vrot.lane.b32.xlu0 %v482, 113
        %v1397 = vpop.permute.xlu0 %1396
        %1398 = vrot.lane.b32.xlu0 %v484, 113
        %v1399 = vpop.permute.xlu0 %1398
        %1400 = vrot.lane.b32.xlu0 %v486, 113
        %v1401 = vpop.permute.xlu0 %1400
        %vm1402 = vcmp.lt.s32.totalorder %v504, 113
        %v1403 = vsel %vm1402, %v1387, %v1395
        %v1404 = vsel %vm1402, %v1389, %v1397
        %v1405 = vsel %vm1402, %v1391, %v1399
        %v1406 = vsel %vm1402, %v1393, %v1401
        %v1407 = vsel %vm1402, %v1395, %v1387
        %v1408 = vsel %vm1402, %v1397, %v1389
        %v1409 = vsel %vm1402, %v1399, %v1391
        %v1410 = vsel %vm1402, %v1401, %v1393
        %s1411 = scalar_lea.vmem [#allocation5], 12
        %v1412 = vld [vmem:[%s1411] sm:$0x3]
        %v1414 = vlaneseq
        %v1415 = vshrl.u32 %v1414, 7
        %v1416 = vsub.s32 0, %v1415
        %v1417 = vrot.slane %v1412, %v1416
        %v1418 = vlaneseq
        %v1419 = vshrl.u32 %v1418, 7
        %v1420 = vsub.s32 1, %v1419
        %v1421 = vrot.slane %v1412, %v1420
        %v1424 = vmul.f32 %v1403, %v1417
        %v1425 = vmul.f32 %v1407, %v1421
        %v1426 = vmul.f32 %v1404, %v1417
        %v1427 = vmul.f32 %v1408, %v1421
        %v1428 = vmul.f32 %v1405, %v1417
        %v1429 = vmul.f32 %v1409, %v1421
        %v1430 = vmul.f32 %v1406, %v1417
        %v1431 = vmul.f32 %v1410, %v1421
        %s1432 = scalar_lea.vmem %s3, 192
        %v1433 = vld [vmem:[%s1432] sm:$0xff]
        %v1434 = vld [vmem:[%s1432 + $0x8] sm:$0xff]
        %v1435 = vld [vmem:[%s1432 + $0x10] sm:$0xff]
        %v1436 = vld [vmem:[%s1432 + $0x18] sm:$0xff]
        %v1438 = vsel %vm589, %v1433, 0
        %v1441 = vsel %vm589, %v1434, 0
        %v1444 = vsel %vm589, %v1435, 0
        %v1447 = vsel %vm589, %v1436, 0
        %1449 = vmatprep.subr.mxu0 %v1425
        %1450 = vmatpush1.msra.mxu0 %v1424
        %1451 = vmatprep.subr.mxu0 %v1427
        %1452 = vmatpush1.msra.mxu0 %v1426
        %1453 = vmatprep.subr.mxu0 %v1429
        %1454 = vmatpush1.msra.mxu0 %v1428
        %1455 = vmatprep.subr.mxu0 %v1431
        %1456 = vmatpush1.msra.mxu0 %v1430
        %1457 = vmatprep.subr.mxu0 0.0
        %1458 = vmatpush1.msra.mxu0 0.0
        %1459 = vmatprep.subr.mxu0 0.0
        %1460 = vmatpush1.msra.mxu0 0.0
        %1461 = vmatprep.subr.mxu0 0.0
        %1462 = vmatpush1.msra.mxu0 0.0
        %1463 = vmatprep.subr.mxu0 0.0
        %1464 = vmatpush1.msra.mxu0 0.0
        %1465 = vmatprep.subr.mxu0 0.0
        %1466 = vmatpush1.msra.mxu0 0.0
        %1467 = vmatprep.subr.mxu0 0.0
        %1468 = vmatpush1.msra.mxu0 0.0
        %1469 = vmatprep.subr.mxu0 0.0
        %1470 = vmatpush1.msra.mxu0 0.0
        %1471 = vmatprep.subr.mxu0 0.0
        %1472 = vmatpush1.msra.mxu0 0.0
        %1473 = vmatprep.subr.mxu0 0.0
        %1474 = vmatpush1.msra.mxu0 0.0
        %1475 = vmatprep.subr.mxu0 0.0
        %1476 = vmatpush1.msra.mxu0 0.0
        %1477 = vmatprep.subr.mxu0 0.0
        %1478 = vmatpush1.msra.mxu0 0.0
        %1479 = vmatprep.subr.mxu0 0.0
        %1480 = vmatpush1.msra.mxu0 0.0
        %1481 = vmatprep.subr.mxu0 0.0
        %1482 = vmatpush1.msra.mxu0 0.0
        %1483 = vmatprep.subr.mxu0 0.0
        %1484 = vmatpush1.msra.mxu0 0.0
        %1485 = vmatprep.subr.mxu0 0.0
        %1486 = vmatpush1.msra.mxu0 0.0
        %1487 = vmatprep.subr.mxu0 0.0
        %1488 = vmatpush1.msra.mxu0 0.0
        %1489 = vmatprep.subr.mxu0 0.0
        %1490 = vmatpush1.msra.mxu0 0.0
        %1491 = vmatprep.subr.mxu0 0.0
        %1492 = vmatpush1.msra.mxu0 0.0
        %1493 = vmatprep.subr.mxu0 0.0
        %1494 = vmatpush1.msra.mxu0 0.0
        %1495 = vmatprep.subr.mxu0 0.0
        %1496 = vmatpush1.msra.mxu0 0.0
        %1497 = vmatprep.subr.mxu0 0.0
        %1498 = vmatpush1.msra.mxu0 0.0
        %1499 = vmatprep.subr.mxu0 0.0
        %1500 = vmatpush1.msra.mxu0 0.0
        %1501 = vmatprep.subr.mxu0 0.0
        %1502 = vmatpush1.msra.mxu0 0.0
        %1503 = vmatprep.subr.mxu0 0.0
        %1504 = vmatpush1.msra.mxu0 0.0
        %1505 = vmatprep.subr.mxu0 0.0
        %1506 = vmatpush1.msra.mxu0 0.0
        %1507 = vmatprep.subr.mxu0 0.0
        %1508 = vmatpush1.msra.mxu0 0.0
        %1509 = vmatprep.subr.mxu0 0.0
        %1510 = vmatpush1.msra.mxu0 0.0
        %1511 = vmatprep.subr.mxu0 0.0
        %1512 = vmatpush1.msra.mxu0 0.0
        %1513 = vmatprep.mubr.f32.mxu0 0.0
        %1514 = vmatmul.mubr.f32.gmra.mrb[0].mxu0 %v1438
        %v1515 = vpop.f32.mrb[0].mxu0
        %v1516 = vadd.f32 0.0, %v1515
        %v1517 = vpop.f32.mrb[0].mxu0
        %v1518 = vadd.f32 0.0, %v1517
        %1519 = vmatprep.mubr.f32.mxu0 0.0
        %1520 = vmatmul.mubr.f32.gmra.mrb[0].mxu0 %v1441
        %v1521 = vpop.f32.mrb[0].mxu0
        %v1522 = vadd.f32 0.0, %v1521
        %v1523 = vpop.f32.mrb[0].mxu0
        %v1524 = vadd.f32 0.0, %v1523
        %1525 = vmatprep.mubr.f32.mxu0 0.0
        %1526 = vmatmul.mubr.f32.gmra.mrb[0].mxu0 %v1444
        %v1527 = vpop.f32.mrb[0].mxu0
        %v1528 = vadd.f32 0.0, %v1527
        %v1529 = vpop.f32.mrb[0].mxu0
        %v1530 = vadd.f32 0.0, %v1529
        %1531 = vmatprep.mubr.f32.mxu0 0.0
        %1532 = vmatmul.mubr.f32.gmra.mrb[0].mxu0 %v1447
        %v1533 = vpop.f32.mrb[0].mxu0
        %v1534 = vadd.f32 0.0, %v1533
        %v1535 = vpop.f32.mrb[0].mxu0
        %v1536 = vadd.f32 0.0, %v1535
        %1537 = vdwg.mxu0
        %v1538 = vadd.f32 %v1378, %v1516
        %v1539 = vadd.f32 %v1379, %v1518
        %v1540 = vadd.f32 %v1380, %v1522
        %v1541 = vadd.f32 %v1381, %v1524
        %v1542 = vadd.f32 %v1382, %v1528
        %v1543 = vadd.f32 %v1383, %v1530
        %v1544 = vadd.f32 %v1384, %v1534
        %v1545 = vadd.f32 %v1385, %v1536
        %1546 = vrot.lane.b32.xlu0 %v479, 112
        %v1547 = vpop.permute.xlu0 %1546
        %1548 = vrot.lane.b32.xlu0 %v481, 112
        %v1549 = vpop.permute.xlu0 %1548
        %1550 = vrot.lane.b32.xlu0 %v483, 112
        %v1551 = vpop.permute.xlu0 %1550
        %1552 = vrot.lane.b32.xlu0 %v485, 112
        %v1553 = vpop.permute.xlu0 %1552
        %1554 = vrot.lane.b32.xlu0 %v480, 112
        %v1555 = vpop.permute.xlu0 %1554
        %1556 = vrot.lane.b32.xlu0 %v482, 112
        %v1557 = vpop.permute.xlu0 %1556
        %1558 = vrot.lane.b32.xlu0 %v484, 112
        %v1559 = vpop.permute.xlu0 %1558
        %1560 = vrot.lane.b32.xlu0 %v486, 112
        %v1561 = vpop.permute.xlu0 %1560
        %vm1562 = vcmp.lt.s32.totalorder %v504, 112
        %v1563 = vsel %vm1562, %v1547, %v1555
        %v1564 = vsel %vm1562, %v1549, %v1557
        %v1565 = vsel %vm1562, %v1551, %v1559
        %v1566 = vsel %vm1562, %v1553, %v1561
        %v1567 = vsel %vm1562, %v1555, %v1547
        %v1568 = vsel %vm1562, %v1557, %v1549
        %v1569 = vsel %vm1562, %v1559, %v1551
        %v1570 = vsel %vm1562, %v1561, %v1553
        %s1571 = scalar_lea.vmem [#allocation5], 14
        %v1572 = vld [vmem:[%s1571] sm:$0x3]
        %v1574 = vlaneseq
        %v1575 = vshrl.u32 %v1574, 7
        %v1576 = vsub.s32 0, %v1575
        %v1577 = vrot.slane %v1572, %v1576
        %v1578 = vlaneseq
        %v1579 = vshrl.u32 %v1578, 7
        %v1580 = vsub.s32 1, %v1579
        %v1581 = vrot.slane %v1572, %v1580
        %v1584 = vmul.f32 %v1563, %v1577
        %v1585 = vmul.f32 %v1567, %v1581
        %v1586 = vmul.f32 %v1564, %v1577
        %v1587 = vmul.f32 %v1568, %v1581
        %v1588 = vmul.f32 %v1565, %v1577
        %v1589 = vmul.f32 %v1569, %v1581
        %v1590 = vmul.f32 %v1566, %v1577
        %v1591 = vmul.f32 %v1570, %v1581
        %s1592 = scalar_lea.vmem %s3, 224
        %v1593 = vld [vmem:[%s1592] sm:$0xff]
        %v1594 = vld [vmem:[%s1592 + $0x8] sm:$0xff]
        %v1595 = vld [vmem:[%s1592 + $0x10] sm:$0xff]
        %v1596 = vld [vmem:[%s1592 + $0x18] sm:$0xff]
        %v1598 = vsel %vm589, %v1593, 0
        %v1601 = vsel %vm589, %v1594, 0
        %v1604 = vsel %vm589, %v1595, 0
        %v1607 = vsel %vm589, %v1596, 0
        %1609 = vmatprep.subr.mxu0 %v1585
        %1610 = vmatpush1.msra.mxu0 %v1584
        %1611 = vmatprep.subr.mxu0 %v1587
        %1612 = vmatpush1.msra.mxu0 %v1586
        %1613 = vmatprep.subr.mxu0 %v1589
        %1614 = vmatpush1.msra.mxu0 %v1588
        %1615 = vmatprep.subr.mxu0 %v1591
        %1616 = vmatpush1.msra.mxu0 %v1590
        %1617 = vmatprep.subr.mxu0 0.0
        %1618 = vmatpush1.msra.mxu0 0.0
        %1619 = vmatprep.subr.mxu0 0.0
        %1620 = vmatpush1.msra.mxu0 0.0
        %1621 = vmatprep.subr.mxu0 0.0
        %1622 = vmatpush1.msra.mxu0 0.0
        %1623 = vmatprep.subr.mxu0 0.0
        %1624 = vmatpush1.msra.mxu0 0.0
        %1625 = vmatprep.subr.mxu0 0.0
        %1626 = vmatpush1.msra.mxu0 0.0
        %1627 = vmatprep.subr.mxu0 0.0
        %1628 = vmatpush1.msra.mxu0 0.0
        %1629 = vmatprep.subr.mxu0 0.0
        %1630 = vmatpush1.msra.mxu0 0.0
        %1631 = vmatprep.subr.mxu0 0.0
        %1632 = vmatpush1.msra.mxu0 0.0
        %1633 = vmatprep.subr.mxu0 0.0
        %1634 = vmatpush1.msra.mxu0 0.0
        %1635 = vmatprep.subr.mxu0 0.0
        %1636 = vmatpush1.msra.mxu0 0.0
        %1637 = vmatprep.subr.mxu0 0.0
        %1638 = vmatpush1.msra.mxu0 0.0
        %1639 = vmatprep.subr.mxu0 0.0
        %1640 = vmatpush1.msra.mxu0 0.0
        %1641 = vmatprep.subr.mxu0 0.0
        %1642 = vmatpush1.msra.mxu0 0.0
        %1643 = vmatprep.subr.mxu0 0.0
        %1644 = vmatpush1.msra.mxu0 0.0
        %1645 = vmatprep.subr.mxu0 0.0
        %1646 = vmatpush1.msra.mxu0 0.0
        %1647 = vmatprep.subr.mxu0 0.0
        %1648 = vmatpush1.msra.mxu0 0.0
        %1649 = vmatprep.subr.mxu0 0.0
        %1650 = vmatpush1.msra.mxu0 0.0
        %1651 = vmatprep.subr.mxu0 0.0
        %1652 = vmatpush1.msra.mxu0 0.0
        %1653 = vmatprep.subr.mxu0 0.0
        %1654 = vmatpush1.msra.mxu0 0.0
        %1655 = vmatprep.subr.mxu0 0.0
        %1656 = vmatpush1.msra.mxu0 0.0
        %1657 = vmatprep.subr.mxu0 0.0
        %1658 = vmatpush1.msra.mxu0 0.0
        %1659 = vmatprep.subr.mxu0 0.0
        %1660 = vmatpush1.msra.mxu0 0.0
        %1661 = vmatprep.subr.mxu0 0.0
        %1662 = vmatpush1.msra.mxu0 0.0
        %1663 = vmatprep.subr.mxu0 0.0
        %1664 = vmatpush1.msra.mxu0 0.0
        %1665 = vmatprep.subr.mxu0 0.0
        %1666 = vmatpush1.msra.mxu0 0.0
        %1667 = vmatprep.subr.mxu0 0.0
        %1668 = vmatpush1.msra.mxu0 0.0
        %1669 = vmatprep.subr.mxu0 0.0
        %1670 = vmatpush1.msra.mxu0 0.0
        %1671 = vmatprep.subr.mxu0 0.0
        %1672 = vmatpush1.msra.mxu0 0.0
        %1673 = vmatprep.mubr.f32.mxu0 0.0
        %1674 = vmatmul.mubr.f32.gmra.mrb[0].mxu0 %v1598
        %v1675 = vpop.f32.mrb[0].mxu0
        %v1676 = vadd.f32 0.0, %v1675
        %v1677 = vpop.f32.mrb[0].mxu0
        %v1678 = vadd.f32 0.0, %v1677
        %1679 = vmatprep.mubr.f32.mxu0 0.0
        %1680 = vmatmul.mubr.f32.gmra.mrb[0].mxu0 %v1601
        %v1681 = vpop.f32.mrb[0].mxu0
        %v1682 = vadd.f32 0.0, %v1681
        %v1683 = vpop.f32.mrb[0].mxu0
        %v1684 = vadd.f32 0.0, %v1683
        %1685 = vmatprep.mubr.f32.mxu0 0.0
        %1686 = vmatmul.mubr.f32.gmra.mrb[0].mxu0 %v1604
        %v1687 = vpop.f32.mrb[0].mxu0
        %v1688 = vadd.f32 0.0, %v1687
        %v1689 = vpop.f32.mrb[0].mxu0
        %v1690 = vadd.f32 0.0, %v1689
        %1691 = vmatprep.mubr.f32.mxu0 0.0
        %1692 = vmatmul.mubr.f32.gmra.mrb[0].mxu0 %v1607
        %v1693 = vpop.f32.mrb[0].mxu0
        %v1694 = vadd.f32 0.0, %v1693
        %v1695 = vpop.f32.mrb[0].mxu0
        %v1696 = vadd.f32 0.0, %v1695
        %1697 = vdwg.mxu0
        %v1698 = vadd.f32 %v1538, %v1676
        %v1699 = vadd.f32 %v1539, %v1678
        %v1700 = vadd.f32 %v1540, %v1682
        %v1701 = vadd.f32 %v1541, %v1684
        %v1702 = vadd.f32 %v1542, %v1688
        %v1703 = vadd.f32 %v1543, %v1690
        %v1704 = vadd.f32 %v1544, %v1694
        %v1705 = vadd.f32 %v1545, %v1696
        %1706 = vrot.lane.b32.xlu0 %v479, 111
        %v1707 = vpop.permute.xlu0 %1706
        %1708 = vrot.lane.b32.xlu0 %v481, 111
        %v1709 = vpop.permute.xlu0 %1708
        %1710 = vrot.lane.b32.xlu0 %v483, 111
        %v1711 = vpop.permute.xlu0 %1710
        %1712 = vrot.lane.b32.xlu0 %v485, 111
        %v1713 = vpop.permute.xlu0 %1712
        %1714 = vrot.lane.b32.xlu0 %v480, 111
        %v1715 = vpop.permute.xlu0 %1714
        %1716 = vrot.lane.b32.xlu0 %v482, 111
        %v1717 = vpop.permute.xlu0 %1716
        %1718 = vrot.lane.b32.xlu0 %v484, 111
        %v1719 = vpop.permute.xlu0 %1718
        %1720 = vrot.lane.b32.xlu0 %v486, 111
        %v1721 = vpop.permute.xlu0 %1720
        %vm1722 = vcmp.lt.s32.totalorder %v504, 111
        %v1723 = vsel %vm1722, %v1707, %v1715
        %v1724 = vsel %vm1722, %v1709, %v1717
        %v1725 = vsel %vm1722, %v1711, %v1719
        %v1726 = vsel %vm1722, %v1713, %v1721
        %v1727 = vsel %vm1722, %v1715, %v1707
        %v1728 = vsel %vm1722, %v1717, %v1709
        %v1729 = vsel %vm1722, %v1719, %v1711
        %v1730 = vsel %vm1722, %v1721, %v1713
        %s1731 = scalar_lea.vmem [#allocation5], 16
        %v1732 = vld [vmem:[%s1731] sm:$0x3]
        %v1734 = vlaneseq
        %v1735 = vshrl.u32 %v1734, 7
        %v1736 = vsub.s32 0, %v1735
        %v1737 = vrot.slane %v1732, %v1736
        %v1738 = vlaneseq
        %v1739 = vshrl.u32 %v1738, 7
        %v1740 = vsub.s32 1, %v1739
        %v1741 = vrot.slane %v1732, %v1740
        %v1744 = vmul.f32 %v1723, %v1737
        %v1745 = vmul.f32 %v1727, %v1741
        %v1746 = vmul.f32 %v1724, %v1737
        %v1747 = vmul.f32 %v1728, %v1741
        %v1748 = vmul.f32 %v1725, %v1737
        %v1749 = vmul.f32 %v1729, %v1741
        %v1750 = vmul.f32 %v1726, %v1737
        %v1751 = vmul.f32 %v1730, %v1741
        %s1752 = scalar_lea.vmem %s3, 256
        %v1753 = vld [vmem:[%s1752] sm:$0xff]
        %v1754 = vld [vmem:[%s1752 + $0x8] sm:$0xff]
        %v1755 = vld [vmem:[%s1752 + $0x10] sm:$0xff]
        %v1756 = vld [vmem:[%s1752 + $0x18] sm:$0xff]
        %v1758 = vsel %vm589, %v1753, 0
        %v1761 = vsel %vm589, %v1754, 0
        %v1764 = vsel %vm589, %v1755, 0
        %v1767 = vsel %vm589, %v1756, 0
        %1769 = vmatprep.subr.mxu0 %v1745
        %1770 = vmatpush1.msra.mxu0 %v1744
        %1771 = vmatprep.subr.mxu0 %v1747
        %1772 = vmatpush1.msra.mxu0 %v1746
        %1773 = vmatprep.subr.mxu0 %v1749
        %1774 = vmatpush1.msra.mxu0 %v1748
        %1775 = vmatprep.subr.mxu0 %v1751
        %1776 = vmatpush1.msra.mxu0 %v1750
        %1777 = vmatprep.subr.mxu0 0.0
        %1778 = vmatpush1.msra.mxu0 0.0
        %1779 = vmatprep.subr.mxu0 0.0
        %1780 = vmatpush1.msra.mxu0 0.0
        %1781 = vmatprep.subr.mxu0 0.0
        %1782 = vmatpush1.msra.mxu0 0.0
        %1783 = vmatprep.subr.mxu0 0.0
        %1784 = vmatpush1.msra.mxu0 0.0
        %1785 = vmatprep.subr.mxu0 0.0
        %1786 = vmatpush1.msra.mxu0 0.0
        %1787 = vmatprep.subr.mxu0 0.0
        %1788 = vmatpush1.msra.mxu0 0.0
        %1789 = vmatprep.subr.mxu0 0.0
        %1790 = vmatpush1.msra.mxu0 0.0
        %1791 = vmatprep.subr.mxu0 0.0
        %1792 = vmatpush1.msra.mxu0 0.0
        %1793 = vmatprep.subr.mxu0 0.0
        %1794 = vmatpush1.msra.mxu0 0.0
        %1795 = vmatprep.subr.mxu0 0.0
        %1796 = vmatpush1.msra.mxu0 0.0
        %1797 = vmatprep.subr.mxu0 0.0
        %1798 = vmatpush1.msra.mxu0 0.0
        %1799 = vmatprep.subr.mxu0 0.0
        %1800 = vmatpush1.msra.mxu0 0.0
        %1801 = vmatprep.subr.mxu0 0.0
        %1802 = vmatpush1.msra.mxu0 0.0
        %1803 = vmatprep.subr.mxu0 0.0
        %1804 = vmatpush1.msra.mxu0 0.0
        %1805 = vmatprep.subr.mxu0 0.0
        %1806 = vmatpush1.msra.mxu0 0.0
        %1807 = vmatprep.subr.mxu0 0.0
        %1808 = vmatpush1.msra.mxu0 0.0
        %1809 = vmatprep.subr.mxu0 0.0
        %1810 = vmatpush1.msra.mxu0 0.0
        %1811 = vmatprep.subr.mxu0 0.0
        %1812 = vmatpush1.msra.mxu0 0.0
        %1813 = vmatprep.subr.mxu0 0.0
        %1814 = vmatpush1.msra.mxu0 0.0
        %1815 = vmatprep.subr.mxu0 0.0
        %1816 = vmatpush1.msra.mxu0 0.0
        %1817 = vmatprep.subr.mxu0 0.0
        %1818 = vmatpush1.msra.mxu0 0.0
        %1819 = vmatprep.subr.mxu0 0.0
        %1820 = vmatpush1.msra.mxu0 0.0
        %1821 = vmatprep.subr.mxu0 0.0
        %1822 = vmatpush1.msra.mxu0 0.0
        %1823 = vmatprep.subr.mxu0 0.0
        %1824 = vmatpush1.msra.mxu0 0.0
        %1825 = vmatprep.subr.mxu0 0.0
        %1826 = vmatpush1.msra.mxu0 0.0
        %1827 = vmatprep.subr.mxu0 0.0
        %1828 = vmatpush1.msra.mxu0 0.0
        %1829 = vmatprep.subr.mxu0 0.0
        %1830 = vmatpush1.msra.mxu0 0.0
        %1831 = vmatprep.subr.mxu0 0.0
        %1832 = vmatpush1.msra.mxu0 0.0
        %1833 = vmatprep.mubr.f32.mxu0 0.0
        %1834 = vmatmul.mubr.f32.gmra.mrb[0].mxu0 %v1758
        %v1835 = vpop.f32.mrb[0].mxu0
        %v1836 = vadd.f32 0.0, %v1835
        %v1837 = vpop.f32.mrb[0].mxu0
        %v1838 = vadd.f32 0.0, %v1837
        %1839 = vmatprep.mubr.f32.mxu0 0.0
        %1840 = vmatmul.mubr.f32.gmra.mrb[0].mxu0 %v1761
        %v1841 = vpop.f32.mrb[0].mxu0
        %v1842 = vadd.f32 0.0, %v1841
        %v1843 = vpop.f32.mrb[0].mxu0
        %v1844 = vadd.f32 0.0, %v1843
        %1845 = vmatprep.mubr.f32.mxu0 0.0
        %1846 = vmatmul.mubr.f32.gmra.mrb[0].mxu0 %v1764
        %v1847 = vpop.f32.mrb[0].mxu0
        %v1848 = vadd.f32 0.0, %v1847
        %v1849 = vpop.f32.mrb[0].mxu0
        %v1850 = vadd.f32 0.0, %v1849
        %1851 = vmatprep.mubr.f32.mxu0 0.0
        %1852 = vmatmul.mubr.f32.gmra.mrb[0].mxu0 %v1767
        %v1853 = vpop.f32.mrb[0].mxu0
        %v1854 = vadd.f32 0.0, %v1853
        %v1855 = vpop.f32.mrb[0].mxu0
        %v1856 = vadd.f32 0.0, %v1855
        %1857 = vdwg.mxu0
        %v1858 = vadd.f32 %v1698, %v1836
        %v1859 = vadd.f32 %v1699, %v1838
        %v1860 = vadd.f32 %v1700, %v1842
        %v1861 = vadd.f32 %v1701, %v1844
        %v1862 = vadd.f32 %v1702, %v1848
        %v1863 = vadd.f32 %v1703, %v1850
        %v1864 = vadd.f32 %v1704, %v1854
        %v1865 = vadd.f32 %v1705, %v1856
        %v1866 = vld [vmem:[%s4] sm:$0xff]
        %v1867 = vld [vmem:[%s4 + $0x8] sm:$0xff]
        %v1868 = vld [vmem:[%s4 + $0x10] sm:$0xff]
        %v1869 = vld [vmem:[%s4 + $0x18] sm:$0xff]
        %1871 = vset.pattern.permute.xlu0 0
        %1872 = vperm.xlu0 %1871, %v1866
        %v1873 = vpop.permute.xlu0 %1872
        %1876 = vset.pattern.permute.xlu0 0
        %1877 = vperm.xlu0 %1876, %v1867
        %v1878 = vpop.permute.xlu0 %1877
        %1881 = vset.pattern.permute.xlu0 0
        %1882 = vperm.xlu0 %1881, %v1868
        %v1883 = vpop.permute.xlu0 %1882
        %1886 = vset.pattern.permute.xlu0 0
        %1887 = vperm.xlu0 %1886, %v1869
        %v1888 = vpop.permute.xlu0 %1887
        %v1890 = vadd.f32 %v1858, %v1873
        %v1891 = vadd.f32 %v1859, %v1873
        %v1892 = vadd.f32 %v1860, %v1878
        %v1893 = vadd.f32 %v1861, %v1878
        %v1894 = vadd.f32 %v1862, %v1883
        %v1895 = vadd.f32 %v1863, %v1883
        %v1896 = vadd.f32 %v1864, %v1888
        %v1897 = vadd.f32 %v1865, %v1888
        %v1898 = vld [vmem:[%s5] sm:$0xff]
        %v1899 = vld [vmem:[%s5 + $0x8] sm:$0xff]
        %v1900 = vld [vmem:[%s5 + $0x10] sm:$0xff]
        %v1901 = vld [vmem:[%s5 + $0x18] sm:$0xff]
        %v1902 = vmul.f32 %v1890, %v1890
        %v1903 = vmul.f32 %v1891, %v1891
        %v1904 = vmul.f32 %v1892, %v1892
        %v1905 = vmul.f32 %v1893, %v1893
        %v1906 = vmul.f32 %v1894, %v1894
        %v1907 = vmul.f32 %v1895, %v1895
        %v1908 = vmul.f32 %v1896, %v1896
        %v1909 = vmul.f32 %v1897, %v1897
        %v1911 = vsel %vm589, %v1898, 0
        %v1914 = vsel %vm589, %v1899, 0
        %v1917 = vsel %vm589, %v1900, 0
        %v1920 = vsel %vm589, %v1901, 0
        %1922 = vmatprep.subr.mxu0 %v1903
        %1923 = vmatpush1.msra.mxu0 %v1902
        %1924 = vmatprep.subr.mxu0 %v1905
        %1925 = vmatpush1.msra.mxu0 %v1904
        %1926 = vmatprep.subr.mxu0 %v1907
        %1927 = vmatpush1.msra.mxu0 %v1906
        %1928 = vmatprep.subr.mxu0 %v1909
        %1929 = vmatpush1.msra.mxu0 %v1908
        %1930 = vmatprep.subr.mxu0 0.0
        %1931 = vmatpush1.msra.mxu0 0.0
        %1932 = vmatprep.subr.mxu0 0.0
        %1933 = vmatpush1.msra.mxu0 0.0
        %1934 = vmatprep.subr.mxu0 0.0
        %1935 = vmatpush1.msra.mxu0 0.0
        %1936 = vmatprep.subr.mxu0 0.0
        %1937 = vmatpush1.msra.mxu0 0.0
        %1938 = vmatprep.subr.mxu0 0.0
        %1939 = vmatpush1.msra.mxu0 0.0
        %1940 = vmatprep.subr.mxu0 0.0
        %1941 = vmatpush1.msra.mxu0 0.0
        %1942 = vmatprep.subr.mxu0 0.0
        %1943 = vmatpush1.msra.mxu0 0.0
        %1944 = vmatprep.subr.mxu0 0.0
        %1945 = vmatpush1.msra.mxu0 0.0
        %1946 = vmatprep.subr.mxu0 0.0
        %1947 = vmatpush1.msra.mxu0 0.0
        %1948 = vmatprep.subr.mxu0 0.0
        %1949 = vmatpush1.msra.mxu0 0.0
        %1950 = vmatprep.subr.mxu0 0.0
        %1951 = vmatpush1.msra.mxu0 0.0
        %1952 = vmatprep.subr.mxu0 0.0
        %1953 = vmatpush1.msra.mxu0 0.0
        %1954 = vmatprep.subr.mxu0 0.0
        %1955 = vmatpush1.msra.mxu0 0.0
        %1956 = vmatprep.subr.mxu0 0.0
        %1957 = vmatpush1.msra.mxu0 0.0
        %1958 = vmatprep.subr.mxu0 0.0
        %1959 = vmatpush1.msra.mxu0 0.0
        %1960 = vmatprep.subr.mxu0 0.0
        %1961 = vmatpush1.msra.mxu0 0.0
        %1962 = vmatprep.subr.mxu0 0.0
        %1963 = vmatpush1.msra.mxu0 0.0
        %1964 = vmatprep.subr.mxu0 0.0
        %1965 = vmatpush1.msra.mxu0 0.0
        %1966 = vmatprep.subr.mxu0 0.0
        %1967 = vmatpush1.msra.mxu0 0.0
        %1968 = vmatprep.subr.mxu0 0.0
        %1969 = vmatpush1.msra.mxu0 0.0
        %1970 = vmatprep.subr.mxu0 0.0
        %1971 = vmatpush1.msra.mxu0 0.0
        %1972 = vmatprep.subr.mxu0 0.0
        %1973 = vmatpush1.msra.mxu0 0.0
        %1974 = vmatprep.subr.mxu0 0.0
        %1975 = vmatpush1.msra.mxu0 0.0
        %1976 = vmatprep.subr.mxu0 0.0
        %1977 = vmatpush1.msra.mxu0 0.0
        %1978 = vmatprep.subr.mxu0 0.0
        %1979 = vmatpush1.msra.mxu0 0.0
        %1980 = vmatprep.subr.mxu0 0.0
        %1981 = vmatpush1.msra.mxu0 0.0
        %1982 = vmatprep.subr.mxu0 0.0
        %1983 = vmatpush1.msra.mxu0 0.0
        %1984 = vmatprep.subr.mxu0 0.0
        %1985 = vmatpush1.msra.mxu0 0.0
        %1986 = vmatprep.mubr.f32.mxu0 0.0
        %1987 = vmatmul.mubr.f32.gmra.mrb[0].mxu0 %v1911
        %v1988 = vpop.f32.mrb[0].mxu0
        %v1989 = vadd.f32 0.0, %v1988
        %v1990 = vpop.f32.mrb[0].mxu0
        %v1991 = vadd.f32 0.0, %v1990
        %1992 = vmatprep.mubr.f32.mxu0 0.0
        %1993 = vmatmul.mubr.f32.gmra.mrb[0].mxu0 %v1914
        %v1994 = vpop.f32.mrb[0].mxu0
        %v1995 = vadd.f32 0.0, %v1994
        %v1996 = vpop.f32.mrb[0].mxu0
        %v1997 = vadd.f32 0.0, %v1996
        %1998 = vmatprep.mubr.f32.mxu0 0.0
        %1999 = vmatmul.mubr.f32.gmra.mrb[0].mxu0 %v1917
        %v2000 = vpop.f32.mrb[0].mxu0
        %v2001 = vadd.f32 0.0, %v2000
        %v2002 = vpop.f32.mrb[0].mxu0
        %v2003 = vadd.f32 0.0, %v2002
        %2004 = vmatprep.mubr.f32.mxu0 0.0
        %2005 = vmatmul.mubr.f32.gmra.mrb[0].mxu0 %v1920
        %v2006 = vpop.f32.mrb[0].mxu0
        %v2007 = vadd.f32 0.0, %v2006
        %v2008 = vpop.f32.mrb[0].mxu0
        %v2009 = vadd.f32 0.0, %v2008
        %2010 = vdwg.mxu0
        %v2011 = vmul.f32 %v1989, 2e-05
        %v2012 = vmul.f32 %v1991, 2e-05
        %v2013 = vmul.f32 %v1995, 2e-05
        %v2014 = vmul.f32 %v1997, 2e-05
        %v2015 = vmul.f32 %v2001, 2e-05
        %v2016 = vmul.f32 %v2003, 2e-05
        %v2017 = vmul.f32 %v2007, 2e-05
        %v2018 = vmul.f32 %v2009, 2e-05
        %v2019 = vadd.f32 %v2011, 1.0
        %v2020 = vadd.f32 %v2012, 1.0
        %v2021 = vadd.f32 %v2013, 1.0
        %v2022 = vadd.f32 %v2014, 1.0
        %v2023 = vadd.f32 %v2015, 1.0
        %v2024 = vadd.f32 %v2016, 1.0
        %v2025 = vadd.f32 %v2017, 1.0
        %v2026 = vadd.f32 %v2018, 1.0
        %v2027 = vrsqrt.pop %v2019
        %v2028 = vrsqrt.pop %v2020
        %v2029 = vrsqrt.pop %v2021
        %v2030 = vrsqrt.pop %v2022
        %v2031 = vrsqrt.pop %v2023
        %v2032 = vrsqrt.pop %v2024
        %v2033 = vrsqrt.pop %v2025
        %v2034 = vrsqrt.pop %v2026
        %v2035 = vrsqrt.pop %v2027
        %v2036 = vmul.f32 %v2027, %v2035
        %vm2037 = vcmp.eq.f32.partialorder %v2027, inf
        %v2038 = vsel %vm2037, %v2027, %v2036
        %vm2039 = vcmp.eq.f32.partialorder %v2027, 0.0
        %v2040 = vand.u32 %v2027, 2147483648
        %v2041 = vsel %vm2039, %v2040, %v2038
        %v2042 = vrsqrt.pop %v2028
        %v2043 = vmul.f32 %v2028, %v2042
        %vm2044 = vcmp.eq.f32.partialorder %v2028, inf
        %v2045 = vsel %vm2044, %v2028, %v2043
        %vm2046 = vcmp.eq.f32.partialorder %v2028, 0.0
        %v2047 = vand.u32 %v2028, 2147483648
        %v2048 = vsel %vm2046, %v2047, %v2045
        %v2049 = vrsqrt.pop %v2029
        %v2050 = vmul.f32 %v2029, %v2049
        %vm2051 = vcmp.eq.f32.partialorder %v2029, inf
        %v2052 = vsel %vm2051, %v2029, %v2050
        %vm2053 = vcmp.eq.f32.partialorder %v2029, 0.0
        %v2054 = vand.u32 %v2029, 2147483648
        %v2055 = vsel %vm2053, %v2054, %v2052
        %v2056 = vrsqrt.pop %v2030
        %v2057 = vmul.f32 %v2030, %v2056
        %vm2058 = vcmp.eq.f32.partialorder %v2030, inf
        %v2059 = vsel %vm2058, %v2030, %v2057
        %vm2060 = vcmp.eq.f32.partialorder %v2030, 0.0
        %v2061 = vand.u32 %v2030, 2147483648
        %v2062 = vsel %vm2060, %v2061, %v2059
        %v2063 = vrsqrt.pop %v2031
        %v2064 = vmul.f32 %v2031, %v2063
        %vm2065 = vcmp.eq.f32.partialorder %v2031, inf
        %v2066 = vsel %vm2065, %v2031, %v2064
        %vm2067 = vcmp.eq.f32.partialorder %v2031, 0.0
        %v2068 = vand.u32 %v2031, 2147483648
        %v2069 = vsel %vm2067, %v2068, %v2066
        %v2070 = vrsqrt.pop %v2032
        %v2071 = vmul.f32 %v2032, %v2070
        %vm2072 = vcmp.eq.f32.partialorder %v2032, inf
        %v2073 = vsel %vm2072, %v2032, %v2071
        %vm2074 = vcmp.eq.f32.partialorder %v2032, 0.0
        %v2075 = vand.u32 %v2032, 2147483648
        %v2076 = vsel %vm2074, %v2075, %v2073
        %v2077 = vrsqrt.pop %v2033
        %v2078 = vmul.f32 %v2033, %v2077
        %vm2079 = vcmp.eq.f32.partialorder %v2033, inf
        %v2080 = vsel %vm2079, %v2033, %v2078
        %vm2081 = vcmp.eq.f32.partialorder %v2033, 0.0
        %v2082 = vand.u32 %v2033, 2147483648
        %v2083 = vsel %vm2081, %v2082, %v2080
        %v2084 = vrsqrt.pop %v2034
        %v2085 = vmul.f32 %v2034, %v2084
        %vm2086 = vcmp.eq.f32.partialorder %v2034, inf
        %v2087 = vsel %vm2086, %v2034, %v2085
        %vm2088 = vcmp.eq.f32.partialorder %v2034, 0.0
        %v2089 = vand.u32 %v2034, 2147483648
        %v2090 = vsel %vm2088, %v2089, %v2087
        %v2091 = vmul.f32 %v2027, %v2041
        %v2092 = vmul.f32 %v2028, %v2048
        %v2093 = vmul.f32 %v2029, %v2055
        %v2094 = vmul.f32 %v2030, %v2062
        %v2095 = vmul.f32 %v2031, %v2069
        %v2096 = vmul.f32 %v2032, %v2076
        %v2097 = vmul.f32 %v2033, %v2083
        %v2098 = vmul.f32 %v2034, %v2090
        %v2099 = vmul.f32 %v1890, %v2091
        %v2100 = vmul.f32 %v1891, %v2092
        %v2101 = vmul.f32 %v1892, %v2093
        %v2102 = vmul.f32 %v1893, %v2094
        %v2103 = vmul.f32 %v1894, %v2095
        %v2104 = vmul.f32 %v1895, %v2096
        %v2105 = vmul.f32 %v1896, %v2097
        %v2106 = vmul.f32 %v1897, %v2098
        %v2107 = vld [vmem:[%s7] sm:$0x3]
        %v2109 = vlaneseq
        %v2110 = vshrl.u32 %v2109, 7
        %v2111 = vsub.s32 0, %v2110
        %v2112 = vrot.slane %v2107, %v2111
        %v2113 = vlaneseq
        %v2114 = vshrl.u32 %v2113, 7
        %v2115 = vsub.s32 1, %v2114
        %v2116 = vrot.slane %v2107, %v2115
        %v2119 = vmul.f32 %v2099, %v2112
        %v2120 = vmul.f32 %v2100, %v2116
        %v2121 = vmul.f32 %v2101, %v2112
        %v2122 = vmul.f32 %v2102, %v2116
        %v2123 = vmul.f32 %v2103, %v2112
        %v2124 = vmul.f32 %v2104, %v2116
        %v2125 = vmul.f32 %v2105, %v2112
        %v2126 = vmul.f32 %v2106, %v2116
        %2127 = vst [vmem:[%s328] sm:$0xff] %v2119
        %2128 = vst [vmem:[%s328 + $0x8] sm:$0xff] %v2120
        %2129 = vst [vmem:[%s328 + $0x10] sm:$0xff] %v2121
        %2130 = vst [vmem:[%s328 + $0x18] sm:$0xff] %v2122
        %2131 = vst [vmem:[%s328 + $0x20] sm:$0xff] %v2123
        %2132 = vst [vmem:[%s328 + $0x28] sm:$0xff] %v2124
        %2133 = vst [vmem:[%s328 + $0x30] sm:$0xff] %v2125
        %2134 = vst [vmem:[%s328 + $0x38] sm:$0xff] %v2126
        %s2135 = sand.u32 %s205, 1
        %s2136 = scalar_lea.sflag [#allocation4], %s2135
        %s2137 = sand.u32 %s205, 1
        %s2138 = smul.addr %s2137, 64
        %s2139 = scalar_lea.vmem [#allocation7], %s2138
        // Predicated region
        $region61: #{tpu_custom_call.1} parent=51 // pred_check
          %p2140 = pneg %p215
        $region62: #{tpu_custom_call.1} parent=51 // pred_check_branch
          %2142 = sbr.rel (%p2140) target = $region64
        $region63: #{tpu_custom_call.1} parent=51 // pred_region
          %s2144 = ssub.s32 1024, 1024
          %2145 = vsyncadd %s2136, %s2144
          %s2146 = smul.addr %s24, 8
          %s2147 = smul.addr %s2146, 128
          %s2148 = scalar_lea.hbm %s8, %s2147
          %s2149 = sshll.u32 %s2139, 4
          %s2150 = int_to_ptr.vmem [resolvable:$true] %s2149
          %2155 = dma.vmem_to_hbm [thread:$0]  %s2150, 1024, %s2148, %s2136, 256, 256, 16
        $region64: #{tpu_custom_call.1} parent=51 // pred_fallthru
          _
      $region52: #{tpu_custom_call.1} parent=5 // pred_fallthru
        _
      %p2156 = scmp.le.s32.totalorder 2, %s19
      // Predicated region
      $region65: #{tpu_custom_call.1} parent=5 // pred_check
        %p2157 = pneg %p2156
      $region66: #{tpu_custom_call.1} parent=5 // pred_check_branch
        %2159 = sbr.rel (%p2157) target = $region68
      $region67: #{tpu_custom_call.1} parent=5 // pred_region
        %s2160 = ssub.s32 %s19, 2
        // Predicated region
        $region69: #{tpu_custom_call.1} parent=67 // pred_check
          %p2161 = pneg %p221
        $region70: #{tpu_custom_call.1} parent=67 // pred_check_branch
          %2163 = sbr.rel (%p2161) target = $region72
        $region71: #{tpu_custom_call.1} parent=67 // pred_region
          %s2164 = sand.u32 %s206, 1
          %s2165 = scalar_lea.sflag [#allocation4], %s2164
          %s2166 = sand.u32 %s206, 1
          %s2167 = smul.addr %s2166, 64
          %s2168 = scalar_lea.vmem [#allocation7], %s2167
          %2169 = dma.done %s2165, 1024
        $region72: #{tpu_custom_call.1} parent=67 // pred_fallthru
          _
      $region68: #{tpu_custom_call.1} parent=5 // pred_fallthru
        _
    $region6: #{tpu_custom_call.1} parent=1 // loop_footer
      %s23 = sadd.s32 1, %s19
    $region7: #{tpu_custom_call.1} parent=1 // loop_footer_branch
      %18 = sbr.rel target = $region3
    $region8: #{tpu_custom_call.1} parent=1 // loop_exit
      _
    %2170 = vsyncpa [#allocation3], 1
    %s2171 = scalar_lea.sflag [#allocation3], 1
    %2172 = vsyncpa %s2171, 1
    %2173 = vsyncpa [#allocation6], 1
    %2174 = vsyncpa [#allocation4], 1
    %s2175 = scalar_lea.sflag [#allocation4], 1
    %2176 = vsyncpa %s2175, 1

</llo_original>
